<compile_context>
chip_gen: v6e
topology: v6e:2x2x1
jax: 0.10.0
libtpu: 0.0.40
codegen_flags: <defaults>
</compile_context>

<pallas_src>
import functools

import jax
import jax.numpy as jnp
from jax.experimental import pallas as pl
from jax.experimental.pallas import tpu as pltpu


def _mlp_kernel(n_layers, vpu_head, precision, *refs):
    """Fused MLP forward.

    refs = (x_ref, W0, b0, W1, b1, ..., o_ref)
      x_ref : [TB, state_size]   (natural layout; batch tile on sublanes)
      Wi    : [out_i, in_i]      (last W pre-transposed to [in, 1] if vpu_head)
      bi    : [out_i, 1]
      o_ref : [1, TB]            (lane-dense value row)
    """
    x_ref = refs[0]
    o_ref = refs[-1]

    x = x_ref[...]                                            # [TB, in0]
    w0 = refs[1][...]                                         # [out0, in0]
    b0 = refs[2][...]                                         # [out0, 1]
    # Contract the feature axis of x without a pre-transpose:
    #   h[o, t] = sum_s W0[o, s] * x[t, s]
    h = jax.lax.dot_general(
        w0, x,
        dimension_numbers=(((1,), (1,)), ((), ())),
        preferred_element_type=jnp.float32,
        precision=precision) + b0                             # [out0, TB]
    if n_layers > 1:
        h = jnp.tanh(h)

    for i in range(1, n_layers):
        w = refs[1 + 2 * i][...]
        b = refs[2 + 2 * i][...]
        last = (i == n_layers - 1)
        if last and vpu_head:
            # Value head: w is pre-transposed to [A, 1].  VPU multiply +
            # sublane reduce -- avoids an M=1 MXU push/pop.
            h = jnp.sum(w * h, axis=0, keepdims=True) + b     # [1, TB]
        else:
            h = jnp.dot(w, h, preferred_element_type=jnp.float32,
                        precision=precision) + b              # [out_i, TB]
        if not last:
            h = jnp.tanh(h)

    o_ref[...] = h.astype(o_ref.dtype)                        # lane-dense store


def _pick_batch_tile(B, tb_max=2048):
    """Batch tile: multiple of 128 dividing B, capped at tb_max, chosen so the
    grid has >= 2 steps when possible (so the 'parallel' axis can shard across
    v7x's 2 TensorCores).  Small / non-128-aligned batches run as one tile
    (block == full dim is always legal)."""
    if B < 256 or B % 128 != 0:
        # TODO(synk): pad awkward large batches up to a multiple of 128 instead
        # of running them as a single oversized tile.
        return B
    tb = min(tb_max, (B // 2) // 128 * 128)
    while B % tb != 0:
        tb -= 128
    return tb


def critic_forward(state, params, *, operand_dtype=None,
                   precision=jax.lax.Precision.HIGHEST, tb_max=2048):
    """state: [B, state_size] f32; params: list of (W [out,in], b [out,1]).

    Returns the value estimate, shape [B] (matches torch.squeeze(..., -1)).

    operand_dtype: optionally cast W and state to bf16 (halves DMA bytes on
      v6e/v7x); accumulation stays f32.  precision: MXU precision for f32
      operands (HIGHEST => true-f32 numerics for the 1e-5 tolerance).
    """
    n_layers = len(params)
    B, state_size = state.shape

    tb = _pick_batch_tile(B, tb_max)
    n_tiles = B // tb

    # Value head as VPU multiply + sublane reduce when the head is scalar.
    vpu_head = n_layers >= 2 and params[-1][0].shape[0] == 1

    flat = []
    for i, (w, b) in enumerate(params):
        if operand_dtype is not None:
            w = w.astype(operand_dtype)
        if vpu_head and i == n_layers - 1:
            w = w.T                       # [1, A] -> [A, 1]; trivially small
        flat.extend([w, b])

    x = state if operand_dtype is None else state.astype(operand_dtype)

    # bf16 operands: precision attribute is moot, keep DEFAULT.
    dot_precision = (jax.lax.Precision.DEFAULT if operand_dtype is not None
                     else precision)

    def resident_spec(arr):
        nd = arr.ndim
        # Constant block index across grid steps -> fetched once, VMEM-resident.
        return pl.BlockSpec(arr.shape, lambda i, _nd=nd: (0,) * _nd)

    in_specs = [pl.BlockSpec((tb, state_size), lambda i: (i, 0))]
    in_specs += [resident_spec(a) for a in flat]
    out_specs = pl.BlockSpec((1, tb), lambda i: (0, i))

    flops = 2 * B * sum(w.shape[0] * w.shape[1] for w, _ in params)
    transcendentals = B * sum(w.shape[0] for w, _ in params[:-1])   # tanh count
    bytes_accessed = (x.size * x.dtype.itemsize
                      + sum(a.size * a.dtype.itemsize for a in flat)
                      + B * 4)

    kernel = functools.partial(_mlp_kernel, n_layers, vpu_head, dot_precision)

    out = pl.pallas_call(
        kernel,
        out_shape=jax.ShapeDtypeStruct((1, B), jnp.float32),
        grid=(n_tiles,),
        in_specs=in_specs,
        out_specs=out_specs,
        compiler_params=pltpu.CompilerParams(
            dimension_semantics=("parallel",)),
        cost_estimate=pl.CostEstimate(
            flops=flops,
            transcendentals=transcendentals,
            bytes_accessed=bytes_accessed),
    )(x, *flat)

    # Output is already lane-dense [1, B]; this is a cheap leading-dim drop,
    # not a (B, 1) squeeze copy.
    return out[0]


def init_critic_params(key, state_size, agent_state_layer, agent_action_layer,
                       agent_hidden_layers):
    """PyTorch-Linear-style init (U[-1/sqrt(fan_in), +]) in [out,in]/[out,1] layout."""
    widths = ([state_size, agent_state_layer]
              + list(agent_hidden_layers)
              + [agent_action_layer, 1])
    params = []
    for i in range(len(widths) - 1):
        fan_in, fan_out = widths[i], widths[i + 1]
        key, kw, kb = jax.random.split(key, 3)
        bound = 1.0 / (fan_in ** 0.5)
        w = jax.random.uniform(kw, (fan_out, fan_in), jnp.float32,
                               minval=-bound, maxval=bound)
        b = jax.random.uniform(kb, (fan_out, 1), jnp.float32,
                               minval=-bound, maxval=bound)
        params.append((w, b))
    return params


def critic_reference(state, params, precision=jax.lax.Precision.HIGHEST):
    """Pure-JAX reference (explicit precision so numerics match the kernel)."""
    h = state.T                                              # [features, B]
    for i, (w, b) in enumerate(params):
        h = jnp.dot(w, h, precision=precision) + b
        if i < len(params) - 1:
            h = jnp.tanh(h)
    return h[0]                                              # [B]


if __name__ == "__main__":
    key = jax.random.PRNGKey(0)

    # Small, module-consistent shapes.
    B = 8
    state_size = 32
    agent_state_layer = 32
    agent_hidden_layers = [32]
    agent_action_layer = 32

    k_state, k_params = jax.random.split(key)
    state = jax.random.normal(k_state, (B, state_size), dtype=jnp.float32)
    params = init_critic_params(k_params, state_size, agent_state_layer,
                                agent_action_layer, agent_hidden_layers)

    value = jax.block_until_ready(critic_forward(state, params))
    ref = critic_reference(state, params)
    assert value.shape == (B,), value.shape
    assert jnp.allclose(value, ref, atol=1e-5, rtol=1e-5), (value, ref)

    # Multi-tile path: B=256 -> TB=128, grid=(2,) so both v7x TCs get work.
    B2 = 256
    k_state2, _ = jax.random.split(k_state)
    state2 = jax.random.normal(k_state2, (B2, state_size), dtype=jnp.float32)
    value2 = jax.block_until_ready(critic_forward(state2, params))
    ref2 = critic_reference(state2, params)
    assert value2.shape == (B2,), value2.shape
    assert jnp.allclose(value2, ref2, atol=1e-5, rtol=1e-5)

    # Optional bf16-operand mode (halves weight/activation DMA bytes on
    # v6e/v7x); accumulation stays f32, so a relaxed tolerance suffices.
    value_bf16 = jax.block_until_ready(
        critic_forward(state2, params, operand_dtype=jnp.bfloat16))
    assert value_bf16.shape == (B2,), value_bf16.shape
    assert jnp.allclose(value_bf16, ref2, atol=2e-2, rtol=2e-2)

    print("KERNEL_OK")
</pallas_src>

<mosaic_0001>
module attributes {stable_mosaic.version = 11 : i64} {
  func.func @_mlp_kernel(%arg0: i32, %arg1: memref<8x32xf32, #tpu.memory_space<vmem>>, %arg2: memref<32x32xf32, #tpu.memory_space<vmem>>, %arg3: memref<32x1xf32, #tpu.memory_space<vmem>>, %arg4: memref<32x32xf32, #tpu.memory_space<vmem>>, %arg5: memref<32x1xf32, #tpu.memory_space<vmem>>, %arg6: memref<32x32xf32, #tpu.memory_space<vmem>>, %arg7: memref<32x1xf32, #tpu.memory_space<vmem>>, %arg8: memref<32x1xf32, #tpu.memory_space<vmem>>, %arg9: memref<1x1xf32, #tpu.memory_space<vmem>>, %arg10: memref<1x8xf32, #tpu.memory_space<vmem>>) attributes {dimension_semantics = [#tpu.dimension_semantics<parallel>], iteration_bounds = array<i64: 1>, scalar_prefetch = 0 : i64, scratch_operands = 0 : i64, tpu.core_type = #tpu.core_type<tc>, window_params = [{transform_indices = @transform_0, window_bounds = array<i64: 8, 32>}, {pipeline_mode = #tpu.pipeline_mode<synchronous>, transform_indices = @transform_1, window_bounds = array<i64: 32, 32>}, {pipeline_mode = #tpu.pipeline_mode<synchronous>, transform_indices = @transform_2, window_bounds = array<i64: 32, 1>}, {pipeline_mode = #tpu.pipeline_mode<synchronous>, transform_indices = @transform_3, window_bounds = array<i64: 32, 32>}, {pipeline_mode = #tpu.pipeline_mode<synchronous>, transform_indices = @transform_4, window_bounds = array<i64: 32, 1>}, {pipeline_mode = #tpu.pipeline_mode<synchronous>, transform_indices = @transform_5, window_bounds = array<i64: 32, 32>}, {pipeline_mode = #tpu.pipeline_mode<synchronous>, transform_indices = @transform_6, window_bounds = array<i64: 32, 1>}, {pipeline_mode = #tpu.pipeline_mode<synchronous>, transform_indices = @transform_7, window_bounds = array<i64: 32, 1>}, {pipeline_mode = #tpu.pipeline_mode<synchronous>, transform_indices = @transform_8, window_bounds = array<i64: 1, 1>}, {transform_indices = @transform_9, window_bounds = array<i64: 1, 8>}]} {
    %c0 = arith.constant 0 : index
    %c0_0 = arith.constant 0 : index
    %0 = vector.load %arg1[%c0, %c0_0] : memref<8x32xf32, #tpu.memory_space<vmem>>, vector<8x32xf32>
    %c0_1 = arith.constant 0 : index
    %c0_2 = arith.constant 0 : index
    %1 = vector.load %arg2[%c0_1, %c0_2] : memref<32x32xf32, #tpu.memory_space<vmem>>, vector<32x32xf32>
    %c0_3 = arith.constant 0 : index
    %c0_4 = arith.constant 0 : index
    %2 = vector.load %arg3[%c0_3, %c0_4] : memref<32x1xf32, #tpu.memory_space<vmem>>, vector<32x1xf32>
    %cst = arith.constant dense<0.000000e+00> : vector<32x8xf32>
    %3 = tpu.matmul %1, %0, %cst {dimension_numbers = #tpu.dot_dimension_numbers<[1], [1], [0], [0], [0, 0, 1, 0], [], []>, precision = #tpu.contract_precision<fp32>} : vector<32x32xf32>, vector<8x32xf32>, vector<32x8xf32> -> vector<32x8xf32>
    %4 = vector.broadcast %2 : vector<32x1xf32> to vector<32x8xf32>
    %5 = arith.addf %3, %4 : vector<32x8xf32>
    %6 = math.tanh %5 : vector<32x8xf32>
    %c0_5 = arith.constant 0 : index
    %c0_6 = arith.constant 0 : index
    %7 = vector.load %arg4[%c0_5, %c0_6] : memref<32x32xf32, #tpu.memory_space<vmem>>, vector<32x32xf32>
    %c0_7 = arith.constant 0 : index
    %c0_8 = arith.constant 0 : index
    %8 = vector.load %arg5[%c0_7, %c0_8] : memref<32x1xf32, #tpu.memory_space<vmem>>, vector<32x1xf32>
    %cst_9 = arith.constant dense<0.000000e+00> : vector<32x8xf32>
    %9 = tpu.matmul %7, %6, %cst_9 {dimension_numbers = #tpu.dot_dimension_numbers<[1], [0], [0], [1], [0, 0, 1, 1], [], []>, precision = #tpu.contract_precision<fp32>} : vector<32x32xf32>, vector<32x8xf32>, vector<32x8xf32> -> vector<32x8xf32>
    %10 = vector.broadcast %8 : vector<32x1xf32> to vector<32x8xf32>
    %11 = arith.addf %9, %10 : vector<32x8xf32>
    %12 = math.tanh %11 : vector<32x8xf32>
    %c0_10 = arith.constant 0 : index
    %c0_11 = arith.constant 0 : index
    %13 = vector.load %arg6[%c0_10, %c0_11] : memref<32x32xf32, #tpu.memory_space<vmem>>, vector<32x32xf32>
    %c0_12 = arith.constant 0 : index
    %c0_13 = arith.constant 0 : index
    %14 = vector.load %arg7[%c0_12, %c0_13] : memref<32x1xf32, #tpu.memory_space<vmem>>, vector<32x1xf32>
    %cst_14 = arith.constant dense<0.000000e+00> : vector<32x8xf32>
    %15 = tpu.matmul %13, %12, %cst_14 {dimension_numbers = #tpu.dot_dimension_numbers<[1], [0], [0], [1], [0, 0, 1, 1], [], []>, precision = #tpu.contract_precision<fp32>} : vector<32x32xf32>, vector<32x8xf32>, vector<32x8xf32> -> vector<32x8xf32>
    %16 = vector.broadcast %14 : vector<32x1xf32> to vector<32x8xf32>
    %17 = arith.addf %15, %16 : vector<32x8xf32>
    %18 = math.tanh %17 : vector<32x8xf32>
    %c0_15 = arith.constant 0 : index
    %c0_16 = arith.constant 0 : index
    %19 = vector.load %arg8[%c0_15, %c0_16] : memref<32x1xf32, #tpu.memory_space<vmem>>, vector<32x1xf32>
    %c0_17 = arith.constant 0 : index
    %c0_18 = arith.constant 0 : index
    %20 = vector.load %arg9[%c0_17, %c0_18] : memref<1x1xf32, #tpu.memory_space<vmem>>, vector<1x1xf32>
    %21 = vector.broadcast %19 : vector<32x1xf32> to vector<32x8xf32>
    %22 = arith.mulf %21, %18 : vector<32x8xf32>
    %cst_19 = arith.constant dense<0.000000e+00> : vector<8xf32>
    %23 = vector.multi_reduction <add>, %22, %cst_19 [0] : vector<32x8xf32> to vector<8xf32>
    %24 = vector.shape_cast %23 : vector<8xf32> to vector<1x8xf32>
    %25 = vector.broadcast %20 : vector<1x1xf32> to vector<1x8xf32>
    %26 = arith.addf %24, %25 : vector<1x8xf32>
    %c0_20 = arith.constant 0 : index
    %c0_21 = arith.constant 0 : index
    %27 = vector.load %arg10[%c0_20, %c0_21] : memref<1x8xf32, #tpu.memory_space<vmem>>, vector<1x8xf32>
    tpu.vector_store %arg10[%c0_20, %c0_21], %26 {strides = array<i32>} : memref<1x8xf32, #tpu.memory_space<vmem>>, vector<1x8xf32>,
    return
  }
  func.func @transform_0(%arg0: i32) -> (i32, i32) {
    %c0_i32 = arith.constant 0 : i32
    %c0_i32_0 = arith.constant 0 : i32
    return %arg0, %c0_i32 : i32, i32
  }
  func.func @transform_1(%arg0: i32) -> (i32, i32) {
    %c0_i32 = arith.constant 0 : i32
    %c0_i32_0 = arith.constant 0 : i32
    %c0_i32_1 = arith.constant 0 : i32
    return %c0_i32, %c0_i32_0 : i32, i32
  }
  func.func @transform_2(%arg0: i32) -> (i32, i32) {
    %c0_i32 = arith.constant 0 : i32
    %c0_i32_0 = arith.constant 0 : i32
    %c0_i32_1 = arith.constant 0 : i32
    return %c0_i32, %c0_i32_0 : i32, i32
  }
  func.func @transform_3(%arg0: i32) -> (i32, i32) {
    %c0_i32 = arith.constant 0 : i32
    %c0_i32_0 = arith.constant 0 : i32
    %c0_i32_1 = arith.constant 0 : i32
    return %c0_i32, %c0_i32_0 : i32, i32
  }
  func.func @transform_4(%arg0: i32) -> (i32, i32) {
    %c0_i32 = arith.constant 0 : i32
    %c0_i32_0 = arith.constant 0 : i32
    %c0_i32_1 = arith.constant 0 : i32
    return %c0_i32, %c0_i32_0 : i32, i32
  }
  func.func @transform_5(%arg0: i32) -> (i32, i32) {
    %c0_i32 = arith.constant 0 : i32
    %c0_i32_0 = arith.constant 0 : i32
    %c0_i32_1 = arith.constant 0 : i32
    return %c0_i32, %c0_i32_0 : i32, i32
  }
  func.func @transform_6(%arg0: i32) -> (i32, i32) {
    %c0_i32 = arith.constant 0 : i32
    %c0_i32_0 = arith.constant 0 : i32
    %c0_i32_1 = arith.constant 0 : i32
    return %c0_i32, %c0_i32_0 : i32, i32
  }
  func.func @transform_7(%arg0: i32) -> (i32, i32) {
    %c0_i32 = arith.constant 0 : i32
    %c0_i32_0 = arith.constant 0 : i32
    %c0_i32_1 = arith.constant 0 : i32
    return %c0_i32, %c0_i32_0 : i32, i32
  }
  func.func @transform_8(%arg0: i32) -> (i32, i32) {
    %c0_i32 = arith.constant 0 : i32
    %c0_i32_0 = arith.constant 0 : i32
    %c0_i32_1 = arith.constant 0 : i32
    return %c0_i32, %c0_i32_0 : i32, i32
  }
  func.func @transform_9(%arg0: i32) -> (i32, i32) {
    %c0_i32 = arith.constant 0 : i32
    %c0_i32_0 = arith.constant 0 : i32
    return %c0_i32, %arg0 : i32, i32
  }
}

</mosaic_0001>

<llo_original>
// kernel: tpu_custom_call.1
$region0: #{tpu_custom_call.1}
  #allocation0 [shape = 'u32[]', space=smem, size = 0x4, offset = 0x4, fixed_abs, tag = 'smem constant byte address 0x4 - core index']
  #allocation1 [shape = 'u32[144,128]{1,0:T(1,128)}', space=vmem, size = 0x12000, scoped, tag = 'internal scratch']
  #allocation2 [shape = 'f32[1,1]{1,0:T(1,128)S(1)}', space=vmem, size = 0x200, scoped, tag = 'scoped memory for tpu_custom_call.1']
  %s0 = inlined_call_operand.vmem [shape: f32[8,32], index: 0, kind: input, shape index: {}]
  %s1 = inlined_call_operand.vmem [shape: f32[32,32], index: 1, kind: input, shape index: {}]
  %s2 = inlined_call_operand.vmem [shape: f32[32,1], index: 2, kind: input, shape index: {}]
  %s3 = inlined_call_operand.vmem [shape: f32[32,32], index: 3, kind: input, shape index: {}]
  %s4 = inlined_call_operand.vmem [shape: f32[32,1], index: 4, kind: input, shape index: {}]
  %s5 = inlined_call_operand.vmem [shape: f32[32,32], index: 5, kind: input, shape index: {}]
  %s6 = inlined_call_operand.vmem [shape: f32[32,1], index: 6, kind: input, shape index: {}]
  %s7 = inlined_call_operand.vmem [shape: f32[32,1], index: 7, kind: input, shape index: {}]
  %s8 = inlined_call_operand.<no memory space> [shape: f32[1,1], index: 8, kind: input, shape index: {}]
  %s9 = inlined_call_operand.hbm [shape: f32[1,8], index: 9, kind: output, shape index: {}]
  %s10 = sld [smem:[#allocation0]]
  $region46: #{tpu_custom_call.1} parent=0
    _
  %s12 = ssub.s32 1, %s10
  %s13 = scalar_select 0, %s12, %s10
  %v14 = vstv %s8
  %15 = vst [vmem:[#allocation2] sm:$0x1] %v14
  $region1: #{tpu_custom_call.1} parent=0
    #allocation3 [shape = 'u8[512]{0}', space=vmem, size = 0x400, scoped, tag = 'output window, operand 0, single buffered']
    #allocation4 [shape = 's32[1]{0}', space=sflag, size = 0x4, scoped, tag = 'scoped memory for tpu_custom_call.1']
    %16 = vsyncpa [#allocation4], 0
    // Predicated region
    $region2: #{tpu_custom_call.1} parent=1 // pred_check
      _
    $region3: #{tpu_custom_call.1} parent=1 // pred_check_branch
      %18 = sbr.rel (0) target = $region5
    $region4: #{tpu_custom_call.1} parent=1 // pred_region
      _
    $region5: #{tpu_custom_call.1} parent=1 // pred_fallthru
      _
    // Predicated region
    $region6: #{tpu_custom_call.1} parent=1 // pred_check
      _
    $region7: #{tpu_custom_call.1} parent=1 // pred_check_branch
      %20 = sbr.rel (0) target = $region9
    $region8: #{tpu_custom_call.1} parent=1 // pred_region
      _
    $region9: #{tpu_custom_call.1} parent=1 // pred_fallthru
      _
    // Predicated region
    $region10: #{tpu_custom_call.1} parent=1 // pred_check
      _
    $region11: #{tpu_custom_call.1} parent=1 // pred_check_branch
      %22 = sbr.rel (0) target = $region13
    $region12: #{tpu_custom_call.1} parent=1 // pred_region
      _
    $region13: #{tpu_custom_call.1} parent=1 // pred_fallthru
      _
    // Predicated region
    $region14: #{tpu_custom_call.1} parent=1 // pred_check
      _
    $region15: #{tpu_custom_call.1} parent=1 // pred_check_branch
      %24 = sbr.rel (0) target = $region17
    $region16: #{tpu_custom_call.1} parent=1 // pred_region
      _
    $region17: #{tpu_custom_call.1} parent=1 // pred_fallthru
      _
    // Predicated region
    $region18: #{tpu_custom_call.1} parent=1 // pred_check
      _
    $region19: #{tpu_custom_call.1} parent=1 // pred_check_branch
      %26 = sbr.rel (0) target = $region21
    $region20: #{tpu_custom_call.1} parent=1 // pred_region
      _
    $region21: #{tpu_custom_call.1} parent=1 // pred_fallthru
      _
    // Predicated region
    $region22: #{tpu_custom_call.1} parent=1 // pred_check
      _
    $region23: #{tpu_custom_call.1} parent=1 // pred_check_branch
      %28 = sbr.rel (0) target = $region25
    $region24: #{tpu_custom_call.1} parent=1 // pred_region
      _
    $region25: #{tpu_custom_call.1} parent=1 // pred_fallthru
      _
    // Predicated region
    $region26: #{tpu_custom_call.1} parent=1 // pred_check
      _
    $region27: #{tpu_custom_call.1} parent=1 // pred_check_branch
      %30 = sbr.rel (0) target = $region29
    $region28: #{tpu_custom_call.1} parent=1 // pred_region
      _
    $region29: #{tpu_custom_call.1} parent=1 // pred_fallthru
      _
    // Predicated region
    $region30: #{tpu_custom_call.1} parent=1 // pred_check
      _
    $region31: #{tpu_custom_call.1} parent=1 // pred_check_branch
      %32 = sbr.rel (0) target = $region33
    $region32: #{tpu_custom_call.1} parent=1 // pred_region
      _
    $region33: #{tpu_custom_call.1} parent=1 // pred_fallthru
      _
    // Predicated region
    $region34: #{tpu_custom_call.1} parent=1 // pred_check
      _
    $region35: #{tpu_custom_call.1} parent=1 // pred_check_branch
      %34 = sbr.rel (0) target = $region37
    $region36: #{tpu_custom_call.1} parent=1 // pred_region
      _
    $region37: #{tpu_custom_call.1} parent=1 // pred_fallthru
      _
    %v35 = vld [vmem:[%s0] sm:$0xff]
    %v36 = vld [vmem:[%s1] sm:$0xff]
    %v37 = vld [vmem:[%s1 + $0x8] sm:$0xff]
    %v38 = vld [vmem:[%s1 + $0x10] sm:$0xff]
    %v39 = vld [vmem:[%s1 + $0x18] sm:$0xff]
    %v40 = vld [vmem:[%s2] sm:$0xff]
    %v41 = vld [vmem:[%s2 + $0x8] sm:$0xff]
    %v42 = vld [vmem:[%s2 + $0x10] sm:$0xff]
    %v43 = vld [vmem:[%s2 + $0x18] sm:$0xff]
    %45 = vset.pattern.permute.xlu0 0
    %46 = vperm.xlu0 %45, %v40
    %v47 = vpop.permute.xlu0 %46
    %50 = vset.pattern.permute.xlu0 0
    %51 = vperm.xlu0 %50, %v41
    %v52 = vpop.permute.xlu0 %51
    %55 = vset.pattern.permute.xlu0 0
    %56 = vperm.xlu0 %55, %v42
    %v57 = vpop.permute.xlu0 %56
    %60 = vset.pattern.permute.xlu0 0
    %61 = vperm.xlu0 %60, %v43
    %v62 = vpop.permute.xlu0 %61
    %vm64 = vcmask 261120
    %v66 = vsel %vm64, %v36, 0
    %v69 = vsel %vm64, %v37, 0
    %v72 = vsel %vm64, %v38, 0
    %v75 = vsel %vm64, %v39, 0
    %v78 = vsel %vm64, %v35, 0
    %80 = vmatprep.subr.mxu0 0.0
    %81 = vmatpush1.xpose.msra.mxu0 0.0
    %82 = vmatprep.subr.mxu0 0.0
    %83 = vmatpush1.xpose.msra.mxu0 0.0
    %84 = vmatprep.subr.mxu0 0.0
    %85 = vmatpush1.xpose.msra.mxu0 0.0
    %86 = vmatprep.subr.mxu0 0.0
    %87 = vmatpush1.xpose.msra.mxu0 0.0
    %88 = vmatprep.subr.mxu0 0.0
    %89 = vmatpush1.xpose.msra.mxu0 0.0
    %90 = vmatprep.subr.mxu0 0.0
    %91 = vmatpush1.xpose.msra.mxu0 0.0
    %92 = vmatprep.subr.mxu0 0.0
    %93 = vmatpush1.xpose.msra.mxu0 0.0
    %94 = vmatprep.subr.mxu0 0.0
    %95 = vmatpush1.xpose.msra.mxu0 0.0
    %96 = vmatprep.subr.mxu0 0.0
    %97 = vmatpush1.xpose.msra.mxu0 0.0
    %98 = vmatprep.subr.mxu0 0.0
    %99 = vmatpush1.xpose.msra.mxu0 0.0
    %100 = vmatprep.subr.mxu0 0.0
    %101 = vmatpush1.xpose.msra.mxu0 0.0
    %102 = vmatprep.subr.mxu0 0.0
    %103 = vmatpush1.xpose.msra.mxu0 0.0
    %104 = vmatprep.subr.mxu0 0.0
    %105 = vmatpush1.xpose.msra.mxu0 0.0
    %106 = vmatprep.subr.mxu0 0.0
    %107 = vmatpush1.xpose.msra.mxu0 0.0
    %108 = vmatprep.subr.mxu0 0.0
    %109 = vmatpush1.xpose.msra.mxu0 0.0
    %110 = vmatprep.subr.mxu0 0.0
    %v111 = vand.u32 %v78, 4294901760
    %112 = vmatpush1.xpose.msra.mxu0 %v111
    %113 = vmatprep.subr.mxu0 0.0
    %114 = vmatpush2.xpose.msra.mxu0 0.0
    %115 = vmatprep.subr.mxu0 0.0
    %116 = vmatpush2.xpose.msra.mxu0 0.0
    %117 = vmatprep.subr.mxu0 0.0
    %118 = vmatpush2.xpose.msra.mxu0 0.0
    %119 = vmatprep.subr.mxu0 0.0
    %120 = vmatpush2.xpose.msra.mxu0 0.0
    %121 = vmatprep.subr.mxu0 0.0
    %122 = vmatpush2.xpose.msra.mxu0 0.0
    %123 = vmatprep.subr.mxu0 0.0
    %124 = vmatpush2.xpose.msra.mxu0 0.0
    %125 = vmatprep.subr.mxu0 0.0
    %126 = vmatpush2.xpose.msra.mxu0 0.0
    %127 = vmatprep.subr.mxu0 0.0
    %128 = vmatpush2.xpose.msra.mxu0 0.0
    %129 = vmatprep.subr.mxu0 0.0
    %130 = vmatpush2.xpose.msra.mxu0 0.0
    %131 = vmatprep.subr.mxu0 0.0
    %132 = vmatpush2.xpose.msra.mxu0 0.0
    %133 = vmatprep.subr.mxu0 0.0
    %134 = vmatpush2.xpose.msra.mxu0 0.0
    %135 = vmatprep.subr.mxu0 0.0
    %136 = vmatpush2.xpose.msra.mxu0 0.0
    %137 = vmatprep.subr.mxu0 0.0
    %138 = vmatpush2.xpose.msra.mxu0 0.0
    %139 = vmatprep.subr.mxu0 0.0
    %140 = vmatpush2.xpose.msra.mxu0 0.0
    %141 = vmatprep.subr.mxu0 0.0
    %142 = vmatpush2.xpose.msra.mxu0 0.0
    %143 = vmatprep.subr.mxu0 0.0
    %144 = vmatpush2.xpose.msra.mxu0 0.0
    %145 = vmatprep.mubr.f32.mxu0 0.0
    %v146 = vand.u32 %v66, 4294901760
    %v147 = vsub.f32 %v66, %v146
    %v148 = vand.u32 %v147, 4294901760
    %v149 = vsub.f32 %v147, %v148
    %v150 = vand.u32 %v149, 4294901760
    %151 = vmatmul.mubr.f32.gmra.mxu0 %v150
    %v152 = vpop.f32.mrf.mxu0
    %v153 = vadd.f32 %v47, %v152
    %v154 = vpop.f32.mrf.mxu0
    %155 = vmatprep.mubr.f32.mxu0 0.0
    %v156 = vand.u32 %v69, 4294901760
    %v157 = vsub.f32 %v69, %v156
    %v158 = vand.u32 %v157, 4294901760
    %v159 = vsub.f32 %v157, %v158
    %v160 = vand.u32 %v159, 4294901760
    %161 = vmatmul.mubr.f32.gmra.mxu0 %v160
    %v162 = vpop.f32.mrf.mxu0
    %v163 = vadd.f32 %v52, %v162
    %v164 = vpop.f32.mrf.mxu0
    %165 = vmatprep.mubr.f32.mxu0 0.0
    %v166 = vand.u32 %v72, 4294901760
    %v167 = vsub.f32 %v72, %v166
    %v168 = vand.u32 %v167, 4294901760
    %v169 = vsub.f32 %v167, %v168
    %v170 = vand.u32 %v169, 4294901760
    %171 = vmatmul.mubr.f32.gmra.mxu0 %v170
    %v172 = vpop.f32.mrf.mxu0
    %v173 = vadd.f32 %v57, %v172
    %v174 = vpop.f32.mrf.mxu0
    %175 = vmatprep.mubr.f32.mxu0 0.0
    %v176 = vand.u32 %v75, 4294901760
    %v177 = vsub.f32 %v75, %v176
    %v178 = vand.u32 %v177, 4294901760
    %v179 = vsub.f32 %v177, %v178
    %v180 = vand.u32 %v179, 4294901760
    %181 = vmatmul.mubr.f32.gmra.mxu0 %v180
    %v182 = vpop.f32.mrf.mxu0
    %v183 = vadd.f32 %v62, %v182
    %v184 = vpop.f32.mrf.mxu0
    %185 = vdwg.mxu0
    %186 = vmatprep.subr.mxu0 0.0
    %187 = vmatpush1.xpose.msra.mxu0 0.0
    %188 = vmatprep.subr.mxu0 0.0
    %189 = vmatpush1.xpose.msra.mxu0 0.0
    %190 = vmatprep.subr.mxu0 0.0
    %191 = vmatpush1.xpose.msra.mxu0 0.0
    %192 = vmatprep.subr.mxu0 0.0
    %193 = vmatpush1.xpose.msra.mxu0 0.0
    %194 = vmatprep.subr.mxu0 0.0
    %195 = vmatpush1.xpose.msra.mxu0 0.0
    %196 = vmatprep.subr.mxu0 0.0
    %197 = vmatpush1.xpose.msra.mxu0 0.0
    %198 = vmatprep.subr.mxu0 0.0
    %199 = vmatpush1.xpose.msra.mxu0 0.0
    %200 = vmatprep.subr.mxu0 0.0
    %201 = vmatpush1.xpose.msra.mxu0 0.0
    %202 = vmatprep.subr.mxu0 0.0
    %203 = vmatpush1.xpose.msra.mxu0 0.0
    %204 = vmatprep.subr.mxu0 0.0
    %205 = vmatpush1.xpose.msra.mxu0 0.0
    %206 = vmatprep.subr.mxu0 0.0
    %207 = vmatpush1.xpose.msra.mxu0 0.0
    %208 = vmatprep.subr.mxu0 0.0
    %209 = vmatpush1.xpose.msra.mxu0 0.0
    %210 = vmatprep.subr.mxu0 0.0
    %211 = vmatpush1.xpose.msra.mxu0 0.0
    %212 = vmatprep.subr.mxu0 0.0
    %213 = vmatpush1.xpose.msra.mxu0 0.0
    %214 = vmatprep.subr.mxu0 0.0
    %215 = vmatpush1.xpose.msra.mxu0 0.0
    %216 = vmatprep.subr.mxu0 0.0
    %v217 = vand.u32 %v78, 4294901760
    %v218 = vsub.f32 %v78, %v217
    %v219 = vand.u32 %v218, 4294901760
    %v220 = vsub.f32 %v218, %v219
    %v221 = vand.u32 %v220, 4294901760
    %222 = vmatpush1.xpose.msra.mxu0 %v221
    %223 = vmatprep.subr.mxu0 0.0
    %224 = vmatpush2.xpose.msra.mxu0 0.0
    %225 = vmatprep.subr.mxu0 0.0
    %226 = vmatpush2.xpose.msra.mxu0 0.0
    %227 = vmatprep.subr.mxu0 0.0
    %228 = vmatpush2.xpose.msra.mxu0 0.0
    %229 = vmatprep.subr.mxu0 0.0
    %230 = vmatpush2.xpose.msra.mxu0 0.0
    %231 = vmatprep.subr.mxu0 0.0
    %232 = vmatpush2.xpose.msra.mxu0 0.0
    %233 = vmatprep.subr.mxu0 0.0
    %234 = vmatpush2.xpose.msra.mxu0 0.0
    %235 = vmatprep.subr.mxu0 0.0
    %236 = vmatpush2.xpose.msra.mxu0 0.0
    %237 = vmatprep.subr.mxu0 0.0
    %238 = vmatpush2.xpose.msra.mxu0 0.0
    %239 = vmatprep.subr.mxu0 0.0
    %240 = vmatpush2.xpose.msra.mxu0 0.0
    %241 = vmatprep.subr.mxu0 0.0
    %242 = vmatpush2.xpose.msra.mxu0 0.0
    %243 = vmatprep.subr.mxu0 0.0
    %244 = vmatpush2.xpose.msra.mxu0 0.0
    %245 = vmatprep.subr.mxu0 0.0
    %246 = vmatpush2.xpose.msra.mxu0 0.0
    %247 = vmatprep.subr.mxu0 0.0
    %248 = vmatpush2.xpose.msra.mxu0 0.0
    %249 = vmatprep.subr.mxu0 0.0
    %250 = vmatpush2.xpose.msra.mxu0 0.0
    %251 = vmatprep.subr.mxu0 0.0
    %252 = vmatpush2.xpose.msra.mxu0 0.0
    %253 = vmatprep.subr.mxu0 0.0
    %254 = vmatpush2.xpose.msra.mxu0 0.0
    %255 = vmatprep.mubr.f32.mxu0 0.0
    %v256 = vand.u32 %v66, 4294901760
    %257 = vmatmul.mubr.f32.gmra.mxu0 %v256
    %v258 = vpop.f32.mrf.mxu0
    %v259 = vadd.f32 %v153, %v258
    %v260 = vpop.f32.mrf.mxu0
    %261 = vmatprep.mubr.f32.mxu0 0.0
    %v262 = vand.u32 %v69, 4294901760
    %263 = vmatmul.mubr.f32.gmra.mxu0 %v262
    %v264 = vpop.f32.mrf.mxu0
    %v265 = vadd.f32 %v163, %v264
    %v266 = vpop.f32.mrf.mxu0
    %267 = vmatprep.mubr.f32.mxu0 0.0
    %v268 = vand.u32 %v72, 4294901760
    %269 = vmatmul.mubr.f32.gmra.mxu0 %v268
    %v270 = vpop.f32.mrf.mxu0
    %v271 = vadd.f32 %v173, %v270
    %v272 = vpop.f32.mrf.mxu0
    %273 = vmatprep.mubr.f32.mxu0 0.0
    %v274 = vand.u32 %v75, 4294901760
    %275 = vmatmul.mubr.f32.gmra.mxu0 %v274
    %v276 = vpop.f32.mrf.mxu0
    %v277 = vadd.f32 %v183, %v276
    %v278 = vpop.f32.mrf.mxu0
    %279 = vdwg.mxu0
    %280 = vmatprep.subr.mxu0 0.0
    %281 = vmatpush1.xpose.msra.mxu0 0.0
    %282 = vmatprep.subr.mxu0 0.0
    %283 = vmatpush1.xpose.msra.mxu0 0.0
    %284 = vmatprep.subr.mxu0 0.0
    %285 = vmatpush1.xpose.msra.mxu0 0.0
    %286 = vmatprep.subr.mxu0 0.0
    %287 = vmatpush1.xpose.msra.mxu0 0.0
    %288 = vmatprep.subr.mxu0 0.0
    %289 = vmatpush1.xpose.msra.mxu0 0.0
    %290 = vmatprep.subr.mxu0 0.0
    %291 = vmatpush1.xpose.msra.mxu0 0.0
    %292 = vmatprep.subr.mxu0 0.0
    %293 = vmatpush1.xpose.msra.mxu0 0.0
    %294 = vmatprep.subr.mxu0 0.0
    %295 = vmatpush1.xpose.msra.mxu0 0.0
    %296 = vmatprep.subr.mxu0 0.0
    %297 = vmatpush1.xpose.msra.mxu0 0.0
    %298 = vmatprep.subr.mxu0 0.0
    %299 = vmatpush1.xpose.msra.mxu0 0.0
    %300 = vmatprep.subr.mxu0 0.0
    %301 = vmatpush1.xpose.msra.mxu0 0.0
    %302 = vmatprep.subr.mxu0 0.0
    %303 = vmatpush1.xpose.msra.mxu0 0.0
    %304 = vmatprep.subr.mxu0 0.0
    %305 = vmatpush1.xpose.msra.mxu0 0.0
    %306 = vmatprep.subr.mxu0 0.0
    %307 = vmatpush1.xpose.msra.mxu0 0.0
    %308 = vmatprep.subr.mxu0 0.0
    %309 = vmatpush1.xpose.msra.mxu0 0.0
    %310 = vmatprep.subr.mxu0 0.0
    %v311 = vand.u32 %v78, 4294901760
    %v312 = vsub.f32 %v78, %v311
    %313 = vmatpush1.xpose.msra.mxu0 %v312
    %314 = vmatprep.subr.mxu0 0.0
    %315 = vmatpush2.xpose.msra.mxu0 0.0
    %316 = vmatprep.subr.mxu0 0.0
    %317 = vmatpush2.xpose.msra.mxu0 0.0
    %318 = vmatprep.subr.mxu0 0.0
    %319 = vmatpush2.xpose.msra.mxu0 0.0
    %320 = vmatprep.subr.mxu0 0.0
    %321 = vmatpush2.xpose.msra.mxu0 0.0
    %322 = vmatprep.subr.mxu0 0.0
    %323 = vmatpush2.xpose.msra.mxu0 0.0
    %324 = vmatprep.subr.mxu0 0.0
    %325 = vmatpush2.xpose.msra.mxu0 0.0
    %326 = vmatprep.subr.mxu0 0.0
    %327 = vmatpush2.xpose.msra.mxu0 0.0
    %328 = vmatprep.subr.mxu0 0.0
    %329 = vmatpush2.xpose.msra.mxu0 0.0
    %330 = vmatprep.subr.mxu0 0.0
    %331 = vmatpush2.xpose.msra.mxu0 0.0
    %332 = vmatprep.subr.mxu0 0.0
    %333 = vmatpush2.xpose.msra.mxu0 0.0
    %334 = vmatprep.subr.mxu0 0.0
    %335 = vmatpush2.xpose.msra.mxu0 0.0
    %336 = vmatprep.subr.mxu0 0.0
    %337 = vmatpush2.xpose.msra.mxu0 0.0
    %338 = vmatprep.subr.mxu0 0.0
    %339 = vmatpush2.xpose.msra.mxu0 0.0
    %340 = vmatprep.subr.mxu0 0.0
    %341 = vmatpush2.xpose.msra.mxu0 0.0
    %342 = vmatprep.subr.mxu0 0.0
    %343 = vmatpush2.xpose.msra.mxu0 0.0
    %344 = vmatprep.subr.mxu0 0.0
    %345 = vmatpush2.xpose.msra.mxu0 0.0
    %346 = vmatprep.mubr.f32.mxu0 0.0
    %v347 = vand.u32 %v66, 4294901760
    %v348 = vsub.f32 %v66, %v347
    %349 = vmatmul.mubr.f32.gmra.mxu0 %v348
    %v350 = vpop.f32.mrf.mxu0
    %v351 = vadd.f32 %v259, %v350
    %v352 = vpop.f32.mrf.mxu0
    %353 = vmatprep.mubr.f32.mxu0 0.0
    %v354 = vand.u32 %v69, 4294901760
    %v355 = vsub.f32 %v69, %v354
    %356 = vmatmul.mubr.f32.gmra.mxu0 %v355
    %v357 = vpop.f32.mrf.mxu0
    %v358 = vadd.f32 %v265, %v357
    %v359 = vpop.f32.mrf.mxu0
    %360 = vmatprep.mubr.f32.mxu0 0.0
    %v361 = vand.u32 %v72, 4294901760
    %v362 = vsub.f32 %v72, %v361
    %363 = vmatmul.mubr.f32.gmra.mxu0 %v362
    %v364 = vpop.f32.mrf.mxu0
    %v365 = vadd.f32 %v271, %v364
    %v366 = vpop.f32.mrf.mxu0
    %367 = vmatprep.mubr.f32.mxu0 0.0
    %v368 = vand.u32 %v75, 4294901760
    %v369 = vsub.f32 %v75, %v368
    %370 = vmatmul.mubr.f32.gmra.mxu0 %v369
    %v371 = vpop.f32.mrf.mxu0
    %v372 = vadd.f32 %v277, %v371
    %v373 = vpop.f32.mrf.mxu0
    %374 = vdwg.mxu0
    %375 = vmatprep.subr.mxu0 0.0
    %376 = vmatpush1.xpose.msra.mxu0 0.0
    %377 = vmatprep.subr.mxu0 0.0
    %378 = vmatpush1.xpose.msra.mxu0 0.0
    %379 = vmatprep.subr.mxu0 0.0
    %380 = vmatpush1.xpose.msra.mxu0 0.0
    %381 = vmatprep.subr.mxu0 0.0
    %382 = vmatpush1.xpose.msra.mxu0 0.0
    %383 = vmatprep.subr.mxu0 0.0
    %384 = vmatpush1.xpose.msra.mxu0 0.0
    %385 = vmatprep.subr.mxu0 0.0
    %386 = vmatpush1.xpose.msra.mxu0 0.0
    %387 = vmatprep.subr.mxu0 0.0
    %388 = vmatpush1.xpose.msra.mxu0 0.0
    %389 = vmatprep.subr.mxu0 0.0
    %390 = vmatpush1.xpose.msra.mxu0 0.0
    %391 = vmatprep.subr.mxu0 0.0
    %392 = vmatpush1.xpose.msra.mxu0 0.0
    %393 = vmatprep.subr.mxu0 0.0
    %394 = vmatpush1.xpose.msra.mxu0 0.0
    %395 = vmatprep.subr.mxu0 0.0
    %396 = vmatpush1.xpose.msra.mxu0 0.0
    %397 = vmatprep.subr.mxu0 0.0
    %398 = vmatpush1.xpose.msra.mxu0 0.0
    %399 = vmatprep.subr.mxu0 0.0
    %400 = vmatpush1.xpose.msra.mxu0 0.0
    %401 = vmatprep.subr.mxu0 0.0
    %402 = vmatpush1.xpose.msra.mxu0 0.0
    %403 = vmatprep.subr.mxu0 0.0
    %404 = vmatpush1.xpose.msra.mxu0 0.0
    %405 = vmatprep.subr.mxu0 0.0
    %v406 = vand.u32 %v78, 4294901760
    %407 = vmatpush1.xpose.msra.mxu0 %v406
    %408 = vmatprep.subr.mxu0 0.0
    %409 = vmatpush2.xpose.msra.mxu0 0.0
    %410 = vmatprep.subr.mxu0 0.0
    %411 = vmatpush2.xpose.msra.mxu0 0.0
    %412 = vmatprep.subr.mxu0 0.0
    %413 = vmatpush2.xpose.msra.mxu0 0.0
    %414 = vmatprep.subr.mxu0 0.0
    %415 = vmatpush2.xpose.msra.mxu0 0.0
    %416 = vmatprep.subr.mxu0 0.0
    %417 = vmatpush2.xpose.msra.mxu0 0.0
    %418 = vmatprep.subr.mxu0 0.0
    %419 = vmatpush2.xpose.msra.mxu0 0.0
    %420 = vmatprep.subr.mxu0 0.0
    %421 = vmatpush2.xpose.msra.mxu0 0.0
    %422 = vmatprep.subr.mxu0 0.0
    %423 = vmatpush2.xpose.msra.mxu0 0.0
    %424 = vmatprep.subr.mxu0 0.0
    %425 = vmatpush2.xpose.msra.mxu0 0.0
    %426 = vmatprep.subr.mxu0 0.0
    %427 = vmatpush2.xpose.msra.mxu0 0.0
    %428 = vmatprep.subr.mxu0 0.0
    %429 = vmatpush2.xpose.msra.mxu0 0.0
    %430 = vmatprep.subr.mxu0 0.0
    %431 = vmatpush2.xpose.msra.mxu0 0.0
    %432 = vmatprep.subr.mxu0 0.0
    %433 = vmatpush2.xpose.msra.mxu0 0.0
    %434 = vmatprep.subr.mxu0 0.0
    %435 = vmatpush2.xpose.msra.mxu0 0.0
    %436 = vmatprep.subr.mxu0 0.0
    %437 = vmatpush2.xpose.msra.mxu0 0.0
    %438 = vmatprep.subr.mxu0 0.0
    %439 = vmatpush2.xpose.msra.mxu0 0.0
    %440 = vmatprep.mubr.f32.mxu0 0.0
    %v441 = vand.u32 %v66, 4294901760
    %v442 = vsub.f32 %v66, %v441
    %v443 = vand.u32 %v442, 4294901760
    %444 = vmatmul.mubr.f32.gmra.mxu0 %v443
    %v445 = vpop.f32.mrf.mxu0
    %v446 = vadd.f32 %v351, %v445
    %v447 = vpop.f32.mrf.mxu0
    %448 = vmatprep.mubr.f32.mxu0 0.0
    %v449 = vand.u32 %v69, 4294901760
    %v450 = vsub.f32 %v69, %v449
    %v451 = vand.u32 %v450, 4294901760
    %452 = vmatmul.mubr.f32.gmra.mxu0 %v451
    %v453 = vpop.f32.mrf.mxu0
    %v454 = vadd.f32 %v358, %v453
    %v455 = vpop.f32.mrf.mxu0
    %456 = vmatprep.mubr.f32.mxu0 0.0
    %v457 = vand.u32 %v72, 4294901760
    %v458 = vsub.f32 %v72, %v457
    %v459 = vand.u32 %v458, 4294901760
    %460 = vmatmul.mubr.f32.gmra.mxu0 %v459
    %v461 = vpop.f32.mrf.mxu0
    %v462 = vadd.f32 %v365, %v461
    %v463 = vpop.f32.mrf.mxu0
    %464 = vmatprep.mubr.f32.mxu0 0.0
    %v465 = vand.u32 %v75, 4294901760
    %v466 = vsub.f32 %v75, %v465
    %v467 = vand.u32 %v466, 4294901760
    %468 = vmatmul.mubr.f32.gmra.mxu0 %v467
    %v469 = vpop.f32.mrf.mxu0
    %v470 = vadd.f32 %v372, %v469
    %v471 = vpop.f32.mrf.mxu0
    %472 = vdwg.mxu0
    %473 = vmatprep.subr.mxu0 0.0
    %474 = vmatpush1.xpose.msra.mxu0 0.0
    %475 = vmatprep.subr.mxu0 0.0
    %476 = vmatpush1.xpose.msra.mxu0 0.0
    %477 = vmatprep.subr.mxu0 0.0
    %478 = vmatpush1.xpose.msra.mxu0 0.0
    %479 = vmatprep.subr.mxu0 0.0
    %480 = vmatpush1.xpose.msra.mxu0 0.0
    %481 = vmatprep.subr.mxu0 0.0
    %482 = vmatpush1.xpose.msra.mxu0 0.0
    %483 = vmatprep.subr.mxu0 0.0
    %484 = vmatpush1.xpose.msra.mxu0 0.0
    %485 = vmatprep.subr.mxu0 0.0
    %486 = vmatpush1.xpose.msra.mxu0 0.0
    %487 = vmatprep.subr.mxu0 0.0
    %488 = vmatpush1.xpose.msra.mxu0 0.0
    %489 = vmatprep.subr.mxu0 0.0
    %490 = vmatpush1.xpose.msra.mxu0 0.0
    %491 = vmatprep.subr.mxu0 0.0
    %492 = vmatpush1.xpose.msra.mxu0 0.0
    %493 = vmatprep.subr.mxu0 0.0
    %494 = vmatpush1.xpose.msra.mxu0 0.0
    %495 = vmatprep.subr.mxu0 0.0
    %496 = vmatpush1.xpose.msra.mxu0 0.0
    %497 = vmatprep.subr.mxu0 0.0
    %498 = vmatpush1.xpose.msra.mxu0 0.0
    %499 = vmatprep.subr.mxu0 0.0
    %500 = vmatpush1.xpose.msra.mxu0 0.0
    %501 = vmatprep.subr.mxu0 0.0
    %502 = vmatpush1.xpose.msra.mxu0 0.0
    %503 = vmatprep.subr.mxu0 0.0
    %v504 = vand.u32 %v78, 4294901760
    %v505 = vsub.f32 %v78, %v504
    %v506 = vand.u32 %v505, 4294901760
    %507 = vmatpush1.xpose.msra.mxu0 %v506
    %508 = vmatprep.subr.mxu0 0.0
    %509 = vmatpush2.xpose.msra.mxu0 0.0
    %510 = vmatprep.subr.mxu0 0.0
    %511 = vmatpush2.xpose.msra.mxu0 0.0
    %512 = vmatprep.subr.mxu0 0.0
    %513 = vmatpush2.xpose.msra.mxu0 0.0
    %514 = vmatprep.subr.mxu0 0.0
    %515 = vmatpush2.xpose.msra.mxu0 0.0
    %516 = vmatprep.subr.mxu0 0.0
    %517 = vmatpush2.xpose.msra.mxu0 0.0
    %518 = vmatprep.subr.mxu0 0.0
    %519 = vmatpush2.xpose.msra.mxu0 0.0
    %520 = vmatprep.subr.mxu0 0.0
    %521 = vmatpush2.xpose.msra.mxu0 0.0
    %522 = vmatprep.subr.mxu0 0.0
    %523 = vmatpush2.xpose.msra.mxu0 0.0
    %524 = vmatprep.subr.mxu0 0.0
    %525 = vmatpush2.xpose.msra.mxu0 0.0
    %526 = vmatprep.subr.mxu0 0.0
    %527 = vmatpush2.xpose.msra.mxu0 0.0
    %528 = vmatprep.subr.mxu0 0.0
    %529 = vmatpush2.xpose.msra.mxu0 0.0
    %530 = vmatprep.subr.mxu0 0.0
    %531 = vmatpush2.xpose.msra.mxu0 0.0
    %532 = vmatprep.subr.mxu0 0.0
    %533 = vmatpush2.xpose.msra.mxu0 0.0
    %534 = vmatprep.subr.mxu0 0.0
    %535 = vmatpush2.xpose.msra.mxu0 0.0
    %536 = vmatprep.subr.mxu0 0.0
    %537 = vmatpush2.xpose.msra.mxu0 0.0
    %538 = vmatprep.subr.mxu0 0.0
    %539 = vmatpush2.xpose.msra.mxu0 0.0
    %540 = vmatprep.mubr.f32.mxu0 0.0
    %v541 = vand.u32 %v66, 4294901760
    %542 = vmatmul.mubr.f32.gmra.mxu0 %v541
    %v543 = vpop.f32.mrf.mxu0
    %v544 = vadd.f32 %v446, %v543
    %v545 = vpop.f32.mrf.mxu0
    %546 = vmatprep.mubr.f32.mxu0 0.0
    %v547 = vand.u32 %v69, 4294901760
    %548 = vmatmul.mubr.f32.gmra.mxu0 %v547
    %v549 = vpop.f32.mrf.mxu0
    %v550 = vadd.f32 %v454, %v549
    %v551 = vpop.f32.mrf.mxu0
    %552 = vmatprep.mubr.f32.mxu0 0.0
    %v553 = vand.u32 %v72, 4294901760
    %554 = vmatmul.mubr.f32.gmra.mxu0 %v553
    %v555 = vpop.f32.mrf.mxu0
    %v556 = vadd.f32 %v462, %v555
    %v557 = vpop.f32.mrf.mxu0
    %558 = vmatprep.mubr.f32.mxu0 0.0
    %v559 = vand.u32 %v75, 4294901760
    %560 = vmatmul.mubr.f32.gmra.mxu0 %v559
    %v561 = vpop.f32.mrf.mxu0
    %v562 = vadd.f32 %v470, %v561
    %v563 = vpop.f32.mrf.mxu0
    %564 = vdwg.mxu0
    %565 = vmatprep.subr.mxu0 0.0
    %566 = vmatpush1.xpose.msra.mxu0 0.0
    %567 = vmatprep.subr.mxu0 0.0
    %568 = vmatpush1.xpose.msra.mxu0 0.0
    %569 = vmatprep.subr.mxu0 0.0
    %570 = vmatpush1.xpose.msra.mxu0 0.0
    %571 = vmatprep.subr.mxu0 0.0
    %572 = vmatpush1.xpose.msra.mxu0 0.0
    %573 = vmatprep.subr.mxu0 0.0
    %574 = vmatpush1.xpose.msra.mxu0 0.0
    %575 = vmatprep.subr.mxu0 0.0
    %576 = vmatpush1.xpose.msra.mxu0 0.0
    %577 = vmatprep.subr.mxu0 0.0
    %578 = vmatpush1.xpose.msra.mxu0 0.0
    %579 = vmatprep.subr.mxu0 0.0
    %580 = vmatpush1.xpose.msra.mxu0 0.0
    %581 = vmatprep.subr.mxu0 0.0
    %582 = vmatpush1.xpose.msra.mxu0 0.0
    %583 = vmatprep.subr.mxu0 0.0
    %584 = vmatpush1.xpose.msra.mxu0 0.0
    %585 = vmatprep.subr.mxu0 0.0
    %586 = vmatpush1.xpose.msra.mxu0 0.0
    %587 = vmatprep.subr.mxu0 0.0
    %588 = vmatpush1.xpose.msra.mxu0 0.0
    %589 = vmatprep.subr.mxu0 0.0
    %590 = vmatpush1.xpose.msra.mxu0 0.0
    %591 = vmatprep.subr.mxu0 0.0
    %592 = vmatpush1.xpose.msra.mxu0 0.0
    %593 = vmatprep.subr.mxu0 0.0
    %594 = vmatpush1.xpose.msra.mxu0 0.0
    %595 = vmatprep.subr.mxu0 0.0
    %v596 = vand.u32 %v78, 4294901760
    %597 = vmatpush1.xpose.msra.mxu0 %v596
    %598 = vmatprep.subr.mxu0 0.0
    %599 = vmatpush2.xpose.msra.mxu0 0.0
    %600 = vmatprep.subr.mxu0 0.0
    %601 = vmatpush2.xpose.msra.mxu0 0.0
    %602 = vmatprep.subr.mxu0 0.0
    %603 = vmatpush2.xpose.msra.mxu0 0.0
    %604 = vmatprep.subr.mxu0 0.0
    %605 = vmatpush2.xpose.msra.mxu0 0.0
    %606 = vmatprep.subr.mxu0 0.0
    %607 = vmatpush2.xpose.msra.mxu0 0.0
    %608 = vmatprep.subr.mxu0 0.0
    %609 = vmatpush2.xpose.msra.mxu0 0.0
    %610 = vmatprep.subr.mxu0 0.0
    %611 = vmatpush2.xpose.msra.mxu0 0.0
    %612 = vmatprep.subr.mxu0 0.0
    %613 = vmatpush2.xpose.msra.mxu0 0.0
    %614 = vmatprep.subr.mxu0 0.0
    %615 = vmatpush2.xpose.msra.mxu0 0.0
    %616 = vmatprep.subr.mxu0 0.0
    %617 = vmatpush2.xpose.msra.mxu0 0.0
    %618 = vmatprep.subr.mxu0 0.0
    %619 = vmatpush2.xpose.msra.mxu0 0.0
    %620 = vmatprep.subr.mxu0 0.0
    %621 = vmatpush2.xpose.msra.mxu0 0.0
    %622 = vmatprep.subr.mxu0 0.0
    %623 = vmatpush2.xpose.msra.mxu0 0.0
    %624 = vmatprep.subr.mxu0 0.0
    %625 = vmatpush2.xpose.msra.mxu0 0.0
    %626 = vmatprep.subr.mxu0 0.0
    %627 = vmatpush2.xpose.msra.mxu0 0.0
    %628 = vmatprep.subr.mxu0 0.0
    %629 = vmatpush2.xpose.msra.mxu0 0.0
    %630 = vmatprep.mubr.f32.mxu0 0.0
    %v631 = vand.u32 %v66, 4294901760
    %632 = vmatmul.mubr.f32.gmra.mxu0 %v631
    %v633 = vpop.f32.mrf.mxu0
    %v634 = vadd.f32 %v544, %v633
    %v635 = vpop.f32.mrf.mxu0
    %636 = vmatprep.mubr.f32.mxu0 0.0
    %v637 = vand.u32 %v69, 4294901760
    %638 = vmatmul.mubr.f32.gmra.mxu0 %v637
    %v639 = vpop.f32.mrf.mxu0
    %v640 = vadd.f32 %v550, %v639
    %v641 = vpop.f32.mrf.mxu0
    %642 = vmatprep.mubr.f32.mxu0 0.0
    %v643 = vand.u32 %v72, 4294901760
    %644 = vmatmul.mubr.f32.gmra.mxu0 %v643
    %v645 = vpop.f32.mrf.mxu0
    %v646 = vadd.f32 %v556, %v645
    %v647 = vpop.f32.mrf.mxu0
    %648 = vmatprep.mubr.f32.mxu0 0.0
    %v649 = vand.u32 %v75, 4294901760
    %650 = vmatmul.mubr.f32.gmra.mxu0 %v649
    %v651 = vpop.f32.mrf.mxu0
    %v652 = vadd.f32 %v562, %v651
    %v653 = vpop.f32.mrf.mxu0
    %654 = vdwg.mxu0
    %v655 = vtanh.pop %v634
    %v656 = vtanh.pop %v640
    %v657 = vtanh.pop %v646
    %v658 = vtanh.pop %v652
    %v659 = vld [vmem:[%s3] sm:$0xff]
    %v660 = vld [vmem:[%s3 + $0x8] sm:$0xff]
    %v661 = vld [vmem:[%s3 + $0x10] sm:$0xff]
    %v662 = vld [vmem:[%s3 + $0x18] sm:$0xff]
    %v663 = vld [vmem:[%s4] sm:$0xff]
    %v664 = vld [vmem:[%s4 + $0x8] sm:$0xff]
    %v665 = vld [vmem:[%s4 + $0x10] sm:$0xff]
    %v666 = vld [vmem:[%s4 + $0x18] sm:$0xff]
    %668 = vset.pattern.permute.xlu0 0
    %669 = vperm.xlu0 %668, %v663
    %v670 = vpop.permute.xlu0 %669
    %673 = vset.pattern.permute.xlu0 0
    %674 = vperm.xlu0 %673, %v664
    %v675 = vpop.permute.xlu0 %674
    %678 = vset.pattern.permute.xlu0 0
    %679 = vperm.xlu0 %678, %v665
    %v680 = vpop.permute.xlu0 %679
    %683 = vset.pattern.permute.xlu0 0
    %684 = vperm.xlu0 %683, %v666
    %v685 = vpop.permute.xlu0 %684
    %v688 = vsel %vm64, %v659, 0
    %v691 = vsel %vm64, %v660, 0
    %v694 = vsel %vm64, %v661, 0
    %v697 = vsel %vm64, %v662, 0
    %699 = vmatprep.subr.mxu0 0.0
    %700 = vmatpush1.msra.mxu0 0.0
    %701 = vmatprep.subr.mxu0 0.0
    %702 = vmatpush1.msra.mxu0 0.0
    %703 = vmatprep.subr.mxu0 0.0
    %704 = vmatpush1.msra.mxu0 0.0
    %705 = vmatprep.subr.mxu0 0.0
    %706 = vmatpush1.msra.mxu0 0.0
    %707 = vmatprep.subr.mxu0 0.0
    %708 = vmatpush1.msra.mxu0 0.0
    %709 = vmatprep.subr.mxu0 0.0
    %710 = vmatpush1.msra.mxu0 0.0
    %711 = vmatprep.subr.mxu0 0.0
    %712 = vmatpush1.msra.mxu0 0.0
    %713 = vmatprep.subr.mxu0 0.0
    %714 = vmatpush1.msra.mxu0 0.0
    %715 = vmatprep.subr.mxu0 0.0
    %716 = vmatpush1.msra.mxu0 0.0
    %717 = vmatprep.subr.mxu0 0.0
    %718 = vmatpush1.msra.mxu0 0.0
    %719 = vmatprep.subr.mxu0 0.0
    %720 = vmatpush1.msra.mxu0 0.0
    %721 = vmatprep.subr.mxu0 0.0
    %722 = vmatpush1.msra.mxu0 0.0
    %723 = vmatprep.subr.mxu0 0.0
    %v724 = vand.u32 %v658, 4294901760
    %725 = vmatpush1.msra.mxu0 %v724
    %726 = vmatprep.subr.mxu0 0.0
    %v727 = vand.u32 %v657, 4294901760
    %728 = vmatpush1.msra.mxu0 %v727
    %729 = vmatprep.subr.mxu0 0.0
    %v730 = vand.u32 %v656, 4294901760
    %731 = vmatpush1.msra.mxu0 %v730
    %732 = vmatprep.subr.mxu0 0.0
    %v733 = vand.u32 %v655, 4294901760
    %734 = vmatpush1.msra.mxu0 %v733
    %735 = vmatprep.subr.mxu0 0.0
    %736 = vmatpush2.msra.mxu0 0.0
    %737 = vmatprep.subr.mxu0 0.0
    %738 = vmatpush2.msra.mxu0 0.0
    %739 = vmatprep.subr.mxu0 0.0
    %740 = vmatpush2.msra.mxu0 0.0
    %741 = vmatprep.subr.mxu0 0.0
    %742 = vmatpush2.msra.mxu0 0.0
    %743 = vmatprep.subr.mxu0 0.0
    %744 = vmatpush2.msra.mxu0 0.0
    %745 = vmatprep.subr.mxu0 0.0
    %746 = vmatpush2.msra.mxu0 0.0
    %747 = vmatprep.subr.mxu0 0.0
    %748 = vmatpush2.msra.mxu0 0.0
    %749 = vmatprep.subr.mxu0 0.0
    %750 = vmatpush2.msra.mxu0 0.0
    %751 = vmatprep.subr.mxu0 0.0
    %752 = vmatpush2.msra.mxu0 0.0
    %753 = vmatprep.subr.mxu0 0.0
    %754 = vmatpush2.msra.mxu0 0.0
    %755 = vmatprep.subr.mxu0 0.0
    %756 = vmatpush2.msra.mxu0 0.0
    %757 = vmatprep.subr.mxu0 0.0
    %758 = vmatpush2.msra.mxu0 0.0
    %759 = vmatprep.subr.mxu0 0.0
    %760 = vmatpush2.msra.mxu0 0.0
    %761 = vmatprep.subr.mxu0 0.0
    %762 = vmatpush2.msra.mxu0 0.0
    %763 = vmatprep.subr.mxu0 0.0
    %764 = vmatpush2.msra.mxu0 0.0
    %765 = vmatprep.subr.mxu0 0.0
    %766 = vmatpush2.msra.mxu0 0.0
    %767 = vmatprep.mubr.f32.mxu0 0.0
    %v768 = vand.u32 %v688, 4294901760
    %v769 = vsub.f32 %v688, %v768
    %v770 = vand.u32 %v769, 4294901760
    %v771 = vsub.f32 %v769, %v770
    %v772 = vand.u32 %v771, 4294901760
    %773 = vmatmul.mubr.f32.gmra.mxu0 %v772
    %v774 = vpop.f32.mrf.mxu0
    %v775 = vadd.f32 %v670, %v774
    %v776 = vpop.f32.mrf.mxu0
    %777 = vmatprep.mubr.f32.mxu0 0.0
    %v778 = vand.u32 %v691, 4294901760
    %v779 = vsub.f32 %v691, %v778
    %v780 = vand.u32 %v779, 4294901760
    %v781 = vsub.f32 %v779, %v780
    %v782 = vand.u32 %v781, 4294901760
    %783 = vmatmul.mubr.f32.gmra.mxu0 %v782
    %v784 = vpop.f32.mrf.mxu0
    %v785 = vadd.f32 %v675, %v784
    %v786 = vpop.f32.mrf.mxu0
    %787 = vmatprep.mubr.f32.mxu0 0.0
    %v788 = vand.u32 %v694, 4294901760
    %v789 = vsub.f32 %v694, %v788
    %v790 = vand.u32 %v789, 4294901760
    %v791 = vsub.f32 %v789, %v790
    %v792 = vand.u32 %v791, 4294901760
    %793 = vmatmul.mubr.f32.gmra.mxu0 %v792
    %v794 = vpop.f32.mrf.mxu0
    %v795 = vadd.f32 %v680, %v794
    %v796 = vpop.f32.mrf.mxu0
    %797 = vmatprep.mubr.f32.mxu0 0.0
    %v798 = vand.u32 %v697, 4294901760
    %v799 = vsub.f32 %v697, %v798
    %v800 = vand.u32 %v799, 4294901760
    %v801 = vsub.f32 %v799, %v800
    %v802 = vand.u32 %v801, 4294901760
    %803 = vmatmul.mubr.f32.gmra.mxu0 %v802
    %v804 = vpop.f32.mrf.mxu0
    %v805 = vadd.f32 %v685, %v804
    %v806 = vpop.f32.mrf.mxu0
    %807 = vdwg.mxu0
    %808 = vmatprep.subr.mxu0 0.0
    %809 = vmatpush1.msra.mxu0 0.0
    %810 = vmatprep.subr.mxu0 0.0
    %811 = vmatpush1.msra.mxu0 0.0
    %812 = vmatprep.subr.mxu0 0.0
    %813 = vmatpush1.msra.mxu0 0.0
    %814 = vmatprep.subr.mxu0 0.0
    %815 = vmatpush1.msra.mxu0 0.0
    %816 = vmatprep.subr.mxu0 0.0
    %817 = vmatpush1.msra.mxu0 0.0
    %818 = vmatprep.subr.mxu0 0.0
    %819 = vmatpush1.msra.mxu0 0.0
    %820 = vmatprep.subr.mxu0 0.0
    %821 = vmatpush1.msra.mxu0 0.0
    %822 = vmatprep.subr.mxu0 0.0
    %823 = vmatpush1.msra.mxu0 0.0
    %824 = vmatprep.subr.mxu0 0.0
    %825 = vmatpush1.msra.mxu0 0.0
    %826 = vmatprep.subr.mxu0 0.0
    %827 = vmatpush1.msra.mxu0 0.0
    %828 = vmatprep.subr.mxu0 0.0
    %829 = vmatpush1.msra.mxu0 0.0
    %830 = vmatprep.subr.mxu0 0.0
    %831 = vmatpush1.msra.mxu0 0.0
    %832 = vmatprep.subr.mxu0 0.0
    %v833 = vand.u32 %v658, 4294901760
    %v834 = vsub.f32 %v658, %v833
    %v835 = vand.u32 %v834, 4294901760
    %v836 = vsub.f32 %v834, %v835
    %v837 = vand.u32 %v836, 4294901760
    %838 = vmatpush1.msra.mxu0 %v837
    %839 = vmatprep.subr.mxu0 0.0
    %v840 = vand.u32 %v657, 4294901760
    %v841 = vsub.f32 %v657, %v840
    %v842 = vand.u32 %v841, 4294901760
    %v843 = vsub.f32 %v841, %v842
    %v844 = vand.u32 %v843, 4294901760
    %845 = vmatpush1.msra.mxu0 %v844
    %846 = vmatprep.subr.mxu0 0.0
    %v847 = vand.u32 %v656, 4294901760
    %v848 = vsub.f32 %v656, %v847
    %v849 = vand.u32 %v848, 4294901760
    %v850 = vsub.f32 %v848, %v849
    %v851 = vand.u32 %v850, 4294901760
    %852 = vmatpush1.msra.mxu0 %v851
    %853 = vmatprep.subr.mxu0 0.0
    %v854 = vand.u32 %v655, 4294901760
    %v855 = vsub.f32 %v655, %v854
    %v856 = vand.u32 %v855, 4294901760
    %v857 = vsub.f32 %v855, %v856
    %v858 = vand.u32 %v857, 4294901760
    %859 = vmatpush1.msra.mxu0 %v858
    %860 = vmatprep.subr.mxu0 0.0
    %861 = vmatpush2.msra.mxu0 0.0
    %862 = vmatprep.subr.mxu0 0.0
    %863 = vmatpush2.msra.mxu0 0.0
    %864 = vmatprep.subr.mxu0 0.0
    %865 = vmatpush2.msra.mxu0 0.0
    %866 = vmatprep.subr.mxu0 0.0
    %867 = vmatpush2.msra.mxu0 0.0
    %868 = vmatprep.subr.mxu0 0.0
    %869 = vmatpush2.msra.mxu0 0.0
    %870 = vmatprep.subr.mxu0 0.0
    %871 = vmatpush2.msra.mxu0 0.0
    %872 = vmatprep.subr.mxu0 0.0
    %873 = vmatpush2.msra.mxu0 0.0
    %874 = vmatprep.subr.mxu0 0.0
    %875 = vmatpush2.msra.mxu0 0.0
    %876 = vmatprep.subr.mxu0 0.0
    %877 = vmatpush2.msra.mxu0 0.0
    %878 = vmatprep.subr.mxu0 0.0
    %879 = vmatpush2.msra.mxu0 0.0
    %880 = vmatprep.subr.mxu0 0.0
    %881 = vmatpush2.msra.mxu0 0.0
    %882 = vmatprep.subr.mxu0 0.0
    %883 = vmatpush2.msra.mxu0 0.0
    %884 = vmatprep.subr.mxu0 0.0
    %885 = vmatpush2.msra.mxu0 0.0
    %886 = vmatprep.subr.mxu0 0.0
    %887 = vmatpush2.msra.mxu0 0.0
    %888 = vmatprep.subr.mxu0 0.0
    %889 = vmatpush2.msra.mxu0 0.0
    %890 = vmatprep.subr.mxu0 0.0
    %891 = vmatpush2.msra.mxu0 0.0
    %892 = vmatprep.mubr.f32.mxu0 0.0
    %v893 = vand.u32 %v688, 4294901760
    %894 = vmatmul.mubr.f32.gmra.mxu0 %v893
    %v895 = vpop.f32.mrf.mxu0
    %v896 = vadd.f32 %v775, %v895
    %v897 = vpop.f32.mrf.mxu0
    %898 = vmatprep.mubr.f32.mxu0 0.0
    %v899 = vand.u32 %v691, 4294901760
    %900 = vmatmul.mubr.f32.gmra.mxu0 %v899
    %v901 = vpop.f32.mrf.mxu0
    %v902 = vadd.f32 %v785, %v901
    %v903 = vpop.f32.mrf.mxu0
    %904 = vmatprep.mubr.f32.mxu0 0.0
    %v905 = vand.u32 %v694, 4294901760
    %906 = vmatmul.mubr.f32.gmra.mxu0 %v905
    %v907 = vpop.f32.mrf.mxu0
    %v908 = vadd.f32 %v795, %v907
    %v909 = vpop.f32.mrf.mxu0
    %910 = vmatprep.mubr.f32.mxu0 0.0
    %v911 = vand.u32 %v697, 4294901760
    %912 = vmatmul.mubr.f32.gmra.mxu0 %v911
    %v913 = vpop.f32.mrf.mxu0
    %v914 = vadd.f32 %v805, %v913
    %v915 = vpop.f32.mrf.mxu0
    %916 = vdwg.mxu0
    %917 = vmatprep.subr.mxu0 0.0
    %918 = vmatpush1.msra.mxu0 0.0
    %919 = vmatprep.subr.mxu0 0.0
    %920 = vmatpush1.msra.mxu0 0.0
    %921 = vmatprep.subr.mxu0 0.0
    %922 = vmatpush1.msra.mxu0 0.0
    %923 = vmatprep.subr.mxu0 0.0
    %924 = vmatpush1.msra.mxu0 0.0
    %925 = vmatprep.subr.mxu0 0.0
    %926 = vmatpush1.msra.mxu0 0.0
    %927 = vmatprep.subr.mxu0 0.0
    %928 = vmatpush1.msra.mxu0 0.0
    %929 = vmatprep.subr.mxu0 0.0
    %930 = vmatpush1.msra.mxu0 0.0
    %931 = vmatprep.subr.mxu0 0.0
    %932 = vmatpush1.msra.mxu0 0.0
    %933 = vmatprep.subr.mxu0 0.0
    %934 = vmatpush1.msra.mxu0 0.0
    %935 = vmatprep.subr.mxu0 0.0
    %936 = vmatpush1.msra.mxu0 0.0
    %937 = vmatprep.subr.mxu0 0.0
    %938 = vmatpush1.msra.mxu0 0.0
    %939 = vmatprep.subr.mxu0 0.0
    %940 = vmatpush1.msra.mxu0 0.0
    %941 = vmatprep.subr.mxu0 0.0
    %v942 = vand.u32 %v658, 4294901760
    %v943 = vsub.f32 %v658, %v942
    %944 = vmatpush1.msra.mxu0 %v943
    %945 = vmatprep.subr.mxu0 0.0
    %v946 = vand.u32 %v657, 4294901760
    %v947 = vsub.f32 %v657, %v946
    %948 = vmatpush1.msra.mxu0 %v947
    %949 = vmatprep.subr.mxu0 0.0
    %v950 = vand.u32 %v656, 4294901760
    %v951 = vsub.f32 %v656, %v950
    %952 = vmatpush1.msra.mxu0 %v951
    %953 = vmatprep.subr.mxu0 0.0
    %v954 = vand.u32 %v655, 4294901760
    %v955 = vsub.f32 %v655, %v954
    %956 = vmatpush1.msra.mxu0 %v955
    %957 = vmatprep.subr.mxu0 0.0
    %958 = vmatpush2.msra.mxu0 0.0
    %959 = vmatprep.subr.mxu0 0.0
    %960 = vmatpush2.msra.mxu0 0.0
    %961 = vmatprep.subr.mxu0 0.0
    %962 = vmatpush2.msra.mxu0 0.0
    %963 = vmatprep.subr.mxu0 0.0
    %964 = vmatpush2.msra.mxu0 0.0
    %965 = vmatprep.subr.mxu0 0.0
    %966 = vmatpush2.msra.mxu0 0.0
    %967 = vmatprep.subr.mxu0 0.0
    %968 = vmatpush2.msra.mxu0 0.0
    %969 = vmatprep.subr.mxu0 0.0
    %970 = vmatpush2.msra.mxu0 0.0
    %971 = vmatprep.subr.mxu0 0.0
    %972 = vmatpush2.msra.mxu0 0.0
    %973 = vmatprep.subr.mxu0 0.0
    %974 = vmatpush2.msra.mxu0 0.0
    %975 = vmatprep.subr.mxu0 0.0
    %976 = vmatpush2.msra.mxu0 0.0
    %977 = vmatprep.subr.mxu0 0.0
    %978 = vmatpush2.msra.mxu0 0.0
    %979 = vmatprep.subr.mxu0 0.0
    %980 = vmatpush2.msra.mxu0 0.0
    %981 = vmatprep.subr.mxu0 0.0
    %982 = vmatpush2.msra.mxu0 0.0
    %983 = vmatprep.subr.mxu0 0.0
    %984 = vmatpush2.msra.mxu0 0.0
    %985 = vmatprep.subr.mxu0 0.0
    %986 = vmatpush2.msra.mxu0 0.0
    %987 = vmatprep.subr.mxu0 0.0
    %988 = vmatpush2.msra.mxu0 0.0
    %989 = vmatprep.mubr.f32.mxu0 0.0
    %v990 = vand.u32 %v688, 4294901760
    %v991 = vsub.f32 %v688, %v990
    %992 = vmatmul.mubr.f32.gmra.mxu0 %v991
    %v993 = vpop.f32.mrf.mxu0
    %v994 = vadd.f32 %v896, %v993
    %v995 = vpop.f32.mrf.mxu0
    %996 = vmatprep.mubr.f32.mxu0 0.0
    %v997 = vand.u32 %v691, 4294901760
    %v998 = vsub.f32 %v691, %v997
    %999 = vmatmul.mubr.f32.gmra.mxu0 %v998
    %v1000 = vpop.f32.mrf.mxu0
    %v1001 = vadd.f32 %v902, %v1000
    %v1002 = vpop.f32.mrf.mxu0
    %1003 = vmatprep.mubr.f32.mxu0 0.0
    %v1004 = vand.u32 %v694, 4294901760
    %v1005 = vsub.f32 %v694, %v1004
    %1006 = vmatmul.mubr.f32.gmra.mxu0 %v1005
    %v1007 = vpop.f32.mrf.mxu0
    %v1008 = vadd.f32 %v908, %v1007
    %v1009 = vpop.f32.mrf.mxu0
    %1010 = vmatprep.mubr.f32.mxu0 0.0
    %v1011 = vand.u32 %v697, 4294901760
    %v1012 = vsub.f32 %v697, %v1011
    %1013 = vmatmul.mubr.f32.gmra.mxu0 %v1012
    %v1014 = vpop.f32.mrf.mxu0
    %v1015 = vadd.f32 %v914, %v1014
    %v1016 = vpop.f32.mrf.mxu0
    %1017 = vdwg.mxu0
    %1018 = vmatprep.subr.mxu0 0.0
    %1019 = vmatpush1.msra.mxu0 0.0
    %1020 = vmatprep.subr.mxu0 0.0
    %1021 = vmatpush1.msra.mxu0 0.0
    %1022 = vmatprep.subr.mxu0 0.0
    %1023 = vmatpush1.msra.mxu0 0.0
    %1024 = vmatprep.subr.mxu0 0.0
    %1025 = vmatpush1.msra.mxu0 0.0
    %1026 = vmatprep.subr.mxu0 0.0
    %1027 = vmatpush1.msra.mxu0 0.0
    %1028 = vmatprep.subr.mxu0 0.0
    %1029 = vmatpush1.msra.mxu0 0.0
    %1030 = vmatprep.subr.mxu0 0.0
    %1031 = vmatpush1.msra.mxu0 0.0
    %1032 = vmatprep.subr.mxu0 0.0
    %1033 = vmatpush1.msra.mxu0 0.0
    %1034 = vmatprep.subr.mxu0 0.0
    %1035 = vmatpush1.msra.mxu0 0.0
    %1036 = vmatprep.subr.mxu0 0.0
    %1037 = vmatpush1.msra.mxu0 0.0
    %1038 = vmatprep.subr.mxu0 0.0
    %1039 = vmatpush1.msra.mxu0 0.0
    %1040 = vmatprep.subr.mxu0 0.0
    %1041 = vmatpush1.msra.mxu0 0.0
    %1042 = vmatprep.subr.mxu0 0.0
    %v1043 = vand.u32 %v658, 4294901760
    %1044 = vmatpush1.msra.mxu0 %v1043
    %1045 = vmatprep.subr.mxu0 0.0
    %v1046 = vand.u32 %v657, 4294901760
    %1047 = vmatpush1.msra.mxu0 %v1046
    %1048 = vmatprep.subr.mxu0 0.0
    %v1049 = vand.u32 %v656, 4294901760
    %1050 = vmatpush1.msra.mxu0 %v1049
    %1051 = vmatprep.subr.mxu0 0.0
    %v1052 = vand.u32 %v655, 4294901760
    %1053 = vmatpush1.msra.mxu0 %v1052
    %1054 = vmatprep.subr.mxu0 0.0
    %1055 = vmatpush2.msra.mxu0 0.0
    %1056 = vmatprep.subr.mxu0 0.0
    %1057 = vmatpush2.msra.mxu0 0.0
    %1058 = vmatprep.subr.mxu0 0.0
    %1059 = vmatpush2.msra.mxu0 0.0
    %1060 = vmatprep.subr.mxu0 0.0
    %1061 = vmatpush2.msra.mxu0 0.0
    %1062 = vmatprep.subr.mxu0 0.0
    %1063 = vmatpush2.msra.mxu0 0.0
    %1064 = vmatprep.subr.mxu0 0.0
    %1065 = vmatpush2.msra.mxu0 0.0
    %1066 = vmatprep.subr.mxu0 0.0
    %1067 = vmatpush2.msra.mxu0 0.0
    %1068 = vmatprep.subr.mxu0 0.0
    %1069 = vmatpush2.msra.mxu0 0.0
    %1070 = vmatprep.subr.mxu0 0.0
    %1071 = vmatpush2.msra.mxu0 0.0
    %1072 = vmatprep.subr.mxu0 0.0
    %1073 = vmatpush2.msra.mxu0 0.0
    %1074 = vmatprep.subr.mxu0 0.0
    %1075 = vmatpush2.msra.mxu0 0.0
    %1076 = vmatprep.subr.mxu0 0.0
    %1077 = vmatpush2.msra.mxu0 0.0
    %1078 = vmatprep.subr.mxu0 0.0
    %1079 = vmatpush2.msra.mxu0 0.0
    %1080 = vmatprep.subr.mxu0 0.0
    %1081 = vmatpush2.msra.mxu0 0.0
    %1082 = vmatprep.subr.mxu0 0.0
    %1083 = vmatpush2.msra.mxu0 0.0
    %1084 = vmatprep.subr.mxu0 0.0
    %1085 = vmatpush2.msra.mxu0 0.0
    %1086 = vmatprep.mubr.f32.mxu0 0.0
    %v1087 = vand.u32 %v688, 4294901760
    %v1088 = vsub.f32 %v688, %v1087
    %v1089 = vand.u32 %v1088, 4294901760
    %1090 = vmatmul.mubr.f32.gmra.mxu0 %v1089
    %v1091 = vpop.f32.mrf.mxu0
    %v1092 = vadd.f32 %v994, %v1091
    %v1093 = vpop.f32.mrf.mxu0
    %1094 = vmatprep.mubr.f32.mxu0 0.0
    %v1095 = vand.u32 %v691, 4294901760
    %v1096 = vsub.f32 %v691, %v1095
    %v1097 = vand.u32 %v1096, 4294901760
    %1098 = vmatmul.mubr.f32.gmra.mxu0 %v1097
    %v1099 = vpop.f32.mrf.mxu0
    %v1100 = vadd.f32 %v1001, %v1099
    %v1101 = vpop.f32.mrf.mxu0
    %1102 = vmatprep.mubr.f32.mxu0 0.0
    %v1103 = vand.u32 %v694, 4294901760
    %v1104 = vsub.f32 %v694, %v1103
    %v1105 = vand.u32 %v1104, 4294901760
    %1106 = vmatmul.mubr.f32.gmra.mxu0 %v1105
    %v1107 = vpop.f32.mrf.mxu0
    %v1108 = vadd.f32 %v1008, %v1107
    %v1109 = vpop.f32.mrf.mxu0
    %1110 = vmatprep.mubr.f32.mxu0 0.0
    %v1111 = vand.u32 %v697, 4294901760
    %v1112 = vsub.f32 %v697, %v1111
    %v1113 = vand.u32 %v1112, 4294901760
    %1114 = vmatmul.mubr.f32.gmra.mxu0 %v1113
    %v1115 = vpop.f32.mrf.mxu0
    %v1116 = vadd.f32 %v1015, %v1115
    %v1117 = vpop.f32.mrf.mxu0
    %1118 = vdwg.mxu0
    %1119 = vmatprep.subr.mxu0 0.0
    %1120 = vmatpush1.msra.mxu0 0.0
    %1121 = vmatprep.subr.mxu0 0.0
    %1122 = vmatpush1.msra.mxu0 0.0
    %1123 = vmatprep.subr.mxu0 0.0
    %1124 = vmatpush1.msra.mxu0 0.0
    %1125 = vmatprep.subr.mxu0 0.0
    %1126 = vmatpush1.msra.mxu0 0.0
    %1127 = vmatprep.subr.mxu0 0.0
    %1128 = vmatpush1.msra.mxu0 0.0
    %1129 = vmatprep.subr.mxu0 0.0
    %1130 = vmatpush1.msra.mxu0 0.0
    %1131 = vmatprep.subr.mxu0 0.0
    %1132 = vmatpush1.msra.mxu0 0.0
    %1133 = vmatprep.subr.mxu0 0.0
    %1134 = vmatpush1.msra.mxu0 0.0
    %1135 = vmatprep.subr.mxu0 0.0
    %1136 = vmatpush1.msra.mxu0 0.0
    %1137 = vmatprep.subr.mxu0 0.0
    %1138 = vmatpush1.msra.mxu0 0.0
    %1139 = vmatprep.subr.mxu0 0.0
    %1140 = vmatpush1.msra.mxu0 0.0
    %1141 = vmatprep.subr.mxu0 0.0
    %1142 = vmatpush1.msra.mxu0 0.0
    %1143 = vmatprep.subr.mxu0 0.0
    %v1144 = vand.u32 %v658, 4294901760
    %v1145 = vsub.f32 %v658, %v1144
    %v1146 = vand.u32 %v1145, 4294901760
    %1147 = vmatpush1.msra.mxu0 %v1146
    %1148 = vmatprep.subr.mxu0 0.0
    %v1149 = vand.u32 %v657, 4294901760
    %v1150 = vsub.f32 %v657, %v1149
    %v1151 = vand.u32 %v1150, 4294901760
    %1152 = vmatpush1.msra.mxu0 %v1151
    %1153 = vmatprep.subr.mxu0 0.0
    %v1154 = vand.u32 %v656, 4294901760
    %v1155 = vsub.f32 %v656, %v1154
    %v1156 = vand.u32 %v1155, 4294901760
    %1157 = vmatpush1.msra.mxu0 %v1156
    %1158 = vmatprep.subr.mxu0 0.0
    %v1159 = vand.u32 %v655, 4294901760
    %v1160 = vsub.f32 %v655, %v1159
    %v1161 = vand.u32 %v1160, 4294901760
    %1162 = vmatpush1.msra.mxu0 %v1161
    %1163 = vmatprep.subr.mxu0 0.0
    %1164 = vmatpush2.msra.mxu0 0.0
    %1165 = vmatprep.subr.mxu0 0.0
    %1166 = vmatpush2.msra.mxu0 0.0
    %1167 = vmatprep.subr.mxu0 0.0
    %1168 = vmatpush2.msra.mxu0 0.0
    %1169 = vmatprep.subr.mxu0 0.0
    %1170 = vmatpush2.msra.mxu0 0.0
    %1171 = vmatprep.subr.mxu0 0.0
    %1172 = vmatpush2.msra.mxu0 0.0
    %1173 = vmatprep.subr.mxu0 0.0
    %1174 = vmatpush2.msra.mxu0 0.0
    %1175 = vmatprep.subr.mxu0 0.0
    %1176 = vmatpush2.msra.mxu0 0.0
    %1177 = vmatprep.subr.mxu0 0.0
    %1178 = vmatpush2.msra.mxu0 0.0
    %1179 = vmatprep.subr.mxu0 0.0
    %1180 = vmatpush2.msra.mxu0 0.0
    %1181 = vmatprep.subr.mxu0 0.0
    %1182 = vmatpush2.msra.mxu0 0.0
    %1183 = vmatprep.subr.mxu0 0.0
    %1184 = vmatpush2.msra.mxu0 0.0
    %1185 = vmatprep.subr.mxu0 0.0
    %1186 = vmatpush2.msra.mxu0 0.0
    %1187 = vmatprep.subr.mxu0 0.0
    %1188 = vmatpush2.msra.mxu0 0.0
    %1189 = vmatprep.subr.mxu0 0.0
    %1190 = vmatpush2.msra.mxu0 0.0
    %1191 = vmatprep.subr.mxu0 0.0
    %1192 = vmatpush2.msra.mxu0 0.0
    %1193 = vmatprep.subr.mxu0 0.0
    %1194 = vmatpush2.msra.mxu0 0.0
    %1195 = vmatprep.mubr.f32.mxu0 0.0
    %v1196 = vand.u32 %v688, 4294901760
    %1197 = vmatmul.mubr.f32.gmra.mxu0 %v1196
    %v1198 = vpop.f32.mrf.mxu0
    %v1199 = vadd.f32 %v1092, %v1198
    %v1200 = vpop.f32.mrf.mxu0
    %1201 = vmatprep.mubr.f32.mxu0 0.0
    %v1202 = vand.u32 %v691, 4294901760
    %1203 = vmatmul.mubr.f32.gmra.mxu0 %v1202
    %v1204 = vpop.f32.mrf.mxu0
    %v1205 = vadd.f32 %v1100, %v1204
    %v1206 = vpop.f32.mrf.mxu0
    %1207 = vmatprep.mubr.f32.mxu0 0.0
    %v1208 = vand.u32 %v694, 4294901760
    %1209 = vmatmul.mubr.f32.gmra.mxu0 %v1208
    %v1210 = vpop.f32.mrf.mxu0
    %v1211 = vadd.f32 %v1108, %v1210
    %v1212 = vpop.f32.mrf.mxu0
    %1213 = vmatprep.mubr.f32.mxu0 0.0
    %v1214 = vand.u32 %v697, 4294901760
    %1215 = vmatmul.mubr.f32.gmra.mxu0 %v1214
    %v1216 = vpop.f32.mrf.mxu0
    %v1217 = vadd.f32 %v1116, %v1216
    %v1218 = vpop.f32.mrf.mxu0
    %1219 = vdwg.mxu0
    %1220 = vmatprep.subr.mxu0 0.0
    %1221 = vmatpush1.msra.mxu0 0.0
    %1222 = vmatprep.subr.mxu0 0.0
    %1223 = vmatpush1.msra.mxu0 0.0
    %1224 = vmatprep.subr.mxu0 0.0
    %1225 = vmatpush1.msra.mxu0 0.0
    %1226 = vmatprep.subr.mxu0 0.0
    %1227 = vmatpush1.msra.mxu0 0.0
    %1228 = vmatprep.subr.mxu0 0.0
    %1229 = vmatpush1.msra.mxu0 0.0
    %1230 = vmatprep.subr.mxu0 0.0
    %1231 = vmatpush1.msra.mxu0 0.0
    %1232 = vmatprep.subr.mxu0 0.0
    %1233 = vmatpush1.msra.mxu0 0.0
    %1234 = vmatprep.subr.mxu0 0.0
    %1235 = vmatpush1.msra.mxu0 0.0
    %1236 = vmatprep.subr.mxu0 0.0
    %1237 = vmatpush1.msra.mxu0 0.0
    %1238 = vmatprep.subr.mxu0 0.0
    %1239 = vmatpush1.msra.mxu0 0.0
    %1240 = vmatprep.subr.mxu0 0.0
    %1241 = vmatpush1.msra.mxu0 0.0
    %1242 = vmatprep.subr.mxu0 0.0
    %1243 = vmatpush1.msra.mxu0 0.0
    %1244 = vmatprep.subr.mxu0 0.0
    %v1245 = vand.u32 %v658, 4294901760
    %1246 = vmatpush1.msra.mxu0 %v1245
    %1247 = vmatprep.subr.mxu0 0.0
    %v1248 = vand.u32 %v657, 4294901760
    %1249 = vmatpush1.msra.mxu0 %v1248
    %1250 = vmatprep.subr.mxu0 0.0
    %v1251 = vand.u32 %v656, 4294901760
    %1252 = vmatpush1.msra.mxu0 %v1251
    %1253 = vmatprep.subr.mxu0 0.0
    %v1254 = vand.u32 %v655, 4294901760
    %1255 = vmatpush1.msra.mxu0 %v1254
    %1256 = vmatprep.subr.mxu0 0.0
    %1257 = vmatpush2.msra.mxu0 0.0
    %1258 = vmatprep.subr.mxu0 0.0
    %1259 = vmatpush2.msra.mxu0 0.0
    %1260 = vmatprep.subr.mxu0 0.0
    %1261 = vmatpush2.msra.mxu0 0.0
    %1262 = vmatprep.subr.mxu0 0.0
    %1263 = vmatpush2.msra.mxu0 0.0
    %1264 = vmatprep.subr.mxu0 0.0
    %1265 = vmatpush2.msra.mxu0 0.0
    %1266 = vmatprep.subr.mxu0 0.0
    %1267 = vmatpush2.msra.mxu0 0.0
    %1268 = vmatprep.subr.mxu0 0.0
    %1269 = vmatpush2.msra.mxu0 0.0
    %1270 = vmatprep.subr.mxu0 0.0
    %1271 = vmatpush2.msra.mxu0 0.0
    %1272 = vmatprep.subr.mxu0 0.0
    %1273 = vmatpush2.msra.mxu0 0.0
    %1274 = vmatprep.subr.mxu0 0.0
    %1275 = vmatpush2.msra.mxu0 0.0
    %1276 = vmatprep.subr.mxu0 0.0
    %1277 = vmatpush2.msra.mxu0 0.0
    %1278 = vmatprep.subr.mxu0 0.0
    %1279 = vmatpush2.msra.mxu0 0.0
    %1280 = vmatprep.subr.mxu0 0.0
    %1281 = vmatpush2.msra.mxu0 0.0
    %1282 = vmatprep.subr.mxu0 0.0
    %1283 = vmatpush2.msra.mxu0 0.0
    %1284 = vmatprep.subr.mxu0 0.0
    %1285 = vmatpush2.msra.mxu0 0.0
    %1286 = vmatprep.subr.mxu0 0.0
    %1287 = vmatpush2.msra.mxu0 0.0
    %1288 = vmatprep.mubr.f32.mxu0 0.0
    %v1289 = vand.u32 %v688, 4294901760
    %1290 = vmatmul.mubr.f32.gmra.mxu0 %v1289
    %v1291 = vpop.f32.mrf.mxu0
    %v1292 = vadd.f32 %v1199, %v1291
    %v1293 = vpop.f32.mrf.mxu0
    %1294 = vmatprep.mubr.f32.mxu0 0.0
    %v1295 = vand.u32 %v691, 4294901760
    %1296 = vmatmul.mubr.f32.gmra.mxu0 %v1295
    %v1297 = vpop.f32.mrf.mxu0
    %v1298 = vadd.f32 %v1205, %v1297
    %v1299 = vpop.f32.mrf.mxu0
    %1300 = vmatprep.mubr.f32.mxu0 0.0
    %v1301 = vand.u32 %v694, 4294901760
    %1302 = vmatmul.mubr.f32.gmra.mxu0 %v1301
    %v1303 = vpop.f32.mrf.mxu0
    %v1304 = vadd.f32 %v1211, %v1303
    %v1305 = vpop.f32.mrf.mxu0
    %1306 = vmatprep.mubr.f32.mxu0 0.0
    %v1307 = vand.u32 %v697, 4294901760
    %1308 = vmatmul.mubr.f32.gmra.mxu0 %v1307
    %v1309 = vpop.f32.mrf.mxu0
    %v1310 = vadd.f32 %v1217, %v1309
    %v1311 = vpop.f32.mrf.mxu0
    %1312 = vdwg.mxu0
    %v1313 = vtanh.pop %v1292
    %v1314 = vtanh.pop %v1298
    %v1315 = vtanh.pop %v1304
    %v1316 = vtanh.pop %v1310
    %v1317 = vld [vmem:[%s5] sm:$0xff]
    %v1318 = vld [vmem:[%s5 + $0x8] sm:$0xff]
    %v1319 = vld [vmem:[%s5 + $0x10] sm:$0xff]
    %v1320 = vld [vmem:[%s5 + $0x18] sm:$0xff]
    %v1321 = vld [vmem:[%s6] sm:$0xff]
    %v1322 = vld [vmem:[%s6 + $0x8] sm:$0xff]
    %v1323 = vld [vmem:[%s6 + $0x10] sm:$0xff]
    %v1324 = vld [vmem:[%s6 + $0x18] sm:$0xff]
    %1326 = vset.pattern.permute.xlu0 0
    %1327 = vperm.xlu0 %1326, %v1321
    %v1328 = vpop.permute.xlu0 %1327
    %1331 = vset.pattern.permute.xlu0 0
    %1332 = vperm.xlu0 %1331, %v1322
    %v1333 = vpop.permute.xlu0 %1332
    %1336 = vset.pattern.permute.xlu0 0
    %1337 = vperm.xlu0 %1336, %v1323
    %v1338 = vpop.permute.xlu0 %1337
    %1341 = vset.pattern.permute.xlu0 0
    %1342 = vperm.xlu0 %1341, %v1324
    %v1343 = vpop.permute.xlu0 %1342
    %v1346 = vsel %vm64, %v1317, 0
    %v1349 = vsel %vm64, %v1318, 0
    %v1352 = vsel %vm64, %v1319, 0
    %v1355 = vsel %vm64, %v1320, 0
    %1357 = vmatprep.subr.mxu0 0.0
    %1358 = vmatpush1.msra.mxu0 0.0
    %1359 = vmatprep.subr.mxu0 0.0
    %1360 = vmatpush1.msra.mxu0 0.0
    %1361 = vmatprep.subr.mxu0 0.0
    %1362 = vmatpush1.msra.mxu0 0.0
    %1363 = vmatprep.subr.mxu0 0.0
    %1364 = vmatpush1.msra.mxu0 0.0
    %1365 = vmatprep.subr.mxu0 0.0
    %1366 = vmatpush1.msra.mxu0 0.0
    %1367 = vmatprep.subr.mxu0 0.0
    %1368 = vmatpush1.msra.mxu0 0.0
    %1369 = vmatprep.subr.mxu0 0.0
    %1370 = vmatpush1.msra.mxu0 0.0
    %1371 = vmatprep.subr.mxu0 0.0
    %1372 = vmatpush1.msra.mxu0 0.0
    %1373 = vmatprep.subr.mxu0 0.0
    %1374 = vmatpush1.msra.mxu0 0.0
    %1375 = vmatprep.subr.mxu0 0.0
    %1376 = vmatpush1.msra.mxu0 0.0
    %1377 = vmatprep.subr.mxu0 0.0
    %1378 = vmatpush1.msra.mxu0 0.0
    %1379 = vmatprep.subr.mxu0 0.0
    %1380 = vmatpush1.msra.mxu0 0.0
    %1381 = vmatprep.subr.mxu0 0.0
    %v1382 = vand.u32 %v1316, 4294901760
    %1383 = vmatpush1.msra.mxu0 %v1382
    %1384 = vmatprep.subr.mxu0 0.0
    %v1385 = vand.u32 %v1315, 4294901760
    %1386 = vmatpush1.msra.mxu0 %v1385
    %1387 = vmatprep.subr.mxu0 0.0
    %v1388 = vand.u32 %v1314, 4294901760
    %1389 = vmatpush1.msra.mxu0 %v1388
    %1390 = vmatprep.subr.mxu0 0.0
    %v1391 = vand.u32 %v1313, 4294901760
    %1392 = vmatpush1.msra.mxu0 %v1391
    %1393 = vmatprep.subr.mxu0 0.0
    %1394 = vmatpush2.msra.mxu0 0.0
    %1395 = vmatprep.subr.mxu0 0.0
    %1396 = vmatpush2.msra.mxu0 0.0
    %1397 = vmatprep.subr.mxu0 0.0
    %1398 = vmatpush2.msra.mxu0 0.0
    %1399 = vmatprep.subr.mxu0 0.0
    %1400 = vmatpush2.msra.mxu0 0.0
    %1401 = vmatprep.subr.mxu0 0.0
    %1402 = vmatpush2.msra.mxu0 0.0
    %1403 = vmatprep.subr.mxu0 0.0
    %1404 = vmatpush2.msra.mxu0 0.0
    %1405 = vmatprep.subr.mxu0 0.0
    %1406 = vmatpush2.msra.mxu0 0.0
    %1407 = vmatprep.subr.mxu0 0.0
    %1408 = vmatpush2.msra.mxu0 0.0
    %1409 = vmatprep.subr.mxu0 0.0
    %1410 = vmatpush2.msra.mxu0 0.0
    %1411 = vmatprep.subr.mxu0 0.0
    %1412 = vmatpush2.msra.mxu0 0.0
    %1413 = vmatprep.subr.mxu0 0.0
    %1414 = vmatpush2.msra.mxu0 0.0
    %1415 = vmatprep.subr.mxu0 0.0
    %1416 = vmatpush2.msra.mxu0 0.0
    %1417 = vmatprep.subr.mxu0 0.0
    %1418 = vmatpush2.msra.mxu0 0.0
    %1419 = vmatprep.subr.mxu0 0.0
    %1420 = vmatpush2.msra.mxu0 0.0
    %1421 = vmatprep.subr.mxu0 0.0
    %1422 = vmatpush2.msra.mxu0 0.0
    %1423 = vmatprep.subr.mxu0 0.0
    %1424 = vmatpush2.msra.mxu0 0.0
    %1425 = vmatprep.mubr.f32.mxu0 0.0
    %v1426 = vand.u32 %v1346, 4294901760
    %v1427 = vsub.f32 %v1346, %v1426
    %v1428 = vand.u32 %v1427, 4294901760
    %v1429 = vsub.f32 %v1427, %v1428
    %v1430 = vand.u32 %v1429, 4294901760
    %1431 = vmatmul.mubr.f32.gmra.mxu0 %v1430
    %v1432 = vpop.f32.mrf.mxu0
    %v1433 = vadd.f32 %v1328, %v1432
    %v1434 = vpop.f32.mrf.mxu0
    %1435 = vmatprep.mubr.f32.mxu0 0.0
    %v1436 = vand.u32 %v1349, 4294901760
    %v1437 = vsub.f32 %v1349, %v1436
    %v1438 = vand.u32 %v1437, 4294901760
    %v1439 = vsub.f32 %v1437, %v1438
    %v1440 = vand.u32 %v1439, 4294901760
    %1441 = vmatmul.mubr.f32.gmra.mxu0 %v1440
    %v1442 = vpop.f32.mrf.mxu0
    %v1443 = vadd.f32 %v1333, %v1442
    %v1444 = vpop.f32.mrf.mxu0
    %1445 = vmatprep.mubr.f32.mxu0 0.0
    %v1446 = vand.u32 %v1352, 4294901760
    %v1447 = vsub.f32 %v1352, %v1446
    %v1448 = vand.u32 %v1447, 4294901760
    %v1449 = vsub.f32 %v1447, %v1448
    %v1450 = vand.u32 %v1449, 4294901760
    %1451 = vmatmul.mubr.f32.gmra.mxu0 %v1450
    %v1452 = vpop.f32.mrf.mxu0
    %v1453 = vadd.f32 %v1338, %v1452
    %v1454 = vpop.f32.mrf.mxu0
    %1455 = vmatprep.mubr.f32.mxu0 0.0
    %v1456 = vand.u32 %v1355, 4294901760
    %v1457 = vsub.f32 %v1355, %v1456
    %v1458 = vand.u32 %v1457, 4294901760
    %v1459 = vsub.f32 %v1457, %v1458
    %v1460 = vand.u32 %v1459, 4294901760
    %1461 = vmatmul.mubr.f32.gmra.mxu0 %v1460
    %v1462 = vpop.f32.mrf.mxu0
    %v1463 = vadd.f32 %v1343, %v1462
    %v1464 = vpop.f32.mrf.mxu0
    %1465 = vdwg.mxu0
    %1466 = vmatprep.subr.mxu0 0.0
    %1467 = vmatpush1.msra.mxu0 0.0
    %1468 = vmatprep.subr.mxu0 0.0
    %1469 = vmatpush1.msra.mxu0 0.0
    %1470 = vmatprep.subr.mxu0 0.0
    %1471 = vmatpush1.msra.mxu0 0.0
    %1472 = vmatprep.subr.mxu0 0.0
    %1473 = vmatpush1.msra.mxu0 0.0
    %1474 = vmatprep.subr.mxu0 0.0
    %1475 = vmatpush1.msra.mxu0 0.0
    %1476 = vmatprep.subr.mxu0 0.0
    %1477 = vmatpush1.msra.mxu0 0.0
    %1478 = vmatprep.subr.mxu0 0.0
    %1479 = vmatpush1.msra.mxu0 0.0
    %1480 = vmatprep.subr.mxu0 0.0
    %1481 = vmatpush1.msra.mxu0 0.0
    %1482 = vmatprep.subr.mxu0 0.0
    %1483 = vmatpush1.msra.mxu0 0.0
    %1484 = vmatprep.subr.mxu0 0.0
    %1485 = vmatpush1.msra.mxu0 0.0
    %1486 = vmatprep.subr.mxu0 0.0
    %1487 = vmatpush1.msra.mxu0 0.0
    %1488 = vmatprep.subr.mxu0 0.0
    %1489 = vmatpush1.msra.mxu0 0.0
    %1490 = vmatprep.subr.mxu0 0.0
    %v1491 = vand.u32 %v1316, 4294901760
    %v1492 = vsub.f32 %v1316, %v1491
    %v1493 = vand.u32 %v1492, 4294901760
    %v1494 = vsub.f32 %v1492, %v1493
    %v1495 = vand.u32 %v1494, 4294901760
    %1496 = vmatpush1.msra.mxu0 %v1495
    %1497 = vmatprep.subr.mxu0 0.0
    %v1498 = vand.u32 %v1315, 4294901760
    %v1499 = vsub.f32 %v1315, %v1498
    %v1500 = vand.u32 %v1499, 4294901760
    %v1501 = vsub.f32 %v1499, %v1500
    %v1502 = vand.u32 %v1501, 4294901760
    %1503 = vmatpush1.msra.mxu0 %v1502
    %1504 = vmatprep.subr.mxu0 0.0
    %v1505 = vand.u32 %v1314, 4294901760
    %v1506 = vsub.f32 %v1314, %v1505
    %v1507 = vand.u32 %v1506, 4294901760
    %v1508 = vsub.f32 %v1506, %v1507
    %v1509 = vand.u32 %v1508, 4294901760
    %1510 = vmatpush1.msra.mxu0 %v1509
    %1511 = vmatprep.subr.mxu0 0.0
    %v1512 = vand.u32 %v1313, 4294901760
    %v1513 = vsub.f32 %v1313, %v1512
    %v1514 = vand.u32 %v1513, 4294901760
    %v1515 = vsub.f32 %v1513, %v1514
    %v1516 = vand.u32 %v1515, 4294901760
    %1517 = vmatpush1.msra.mxu0 %v1516
    %1518 = vmatprep.subr.mxu0 0.0
    %1519 = vmatpush2.msra.mxu0 0.0
    %1520 = vmatprep.subr.mxu0 0.0
    %1521 = vmatpush2.msra.mxu0 0.0
    %1522 = vmatprep.subr.mxu0 0.0
    %1523 = vmatpush2.msra.mxu0 0.0
    %1524 = vmatprep.subr.mxu0 0.0
    %1525 = vmatpush2.msra.mxu0 0.0
    %1526 = vmatprep.subr.mxu0 0.0
    %1527 = vmatpush2.msra.mxu0 0.0
    %1528 = vmatprep.subr.mxu0 0.0
    %1529 = vmatpush2.msra.mxu0 0.0
    %1530 = vmatprep.subr.mxu0 0.0
    %1531 = vmatpush2.msra.mxu0 0.0
    %1532 = vmatprep.subr.mxu0 0.0
    %1533 = vmatpush2.msra.mxu0 0.0
    %1534 = vmatprep.subr.mxu0 0.0
    %1535 = vmatpush2.msra.mxu0 0.0
    %1536 = vmatprep.subr.mxu0 0.0
    %1537 = vmatpush2.msra.mxu0 0.0
    %1538 = vmatprep.subr.mxu0 0.0
    %1539 = vmatpush2.msra.mxu0 0.0
    %1540 = vmatprep.subr.mxu0 0.0
    %1541 = vmatpush2.msra.mxu0 0.0
    %1542 = vmatprep.subr.mxu0 0.0
    %1543 = vmatpush2.msra.mxu0 0.0
    %1544 = vmatprep.subr.mxu0 0.0
    %1545 = vmatpush2.msra.mxu0 0.0
    %1546 = vmatprep.subr.mxu0 0.0
    %1547 = vmatpush2.msra.mxu0 0.0
    %1548 = vmatprep.subr.mxu0 0.0
    %1549 = vmatpush2.msra.mxu0 0.0
    %1550 = vmatprep.mubr.f32.mxu0 0.0
    %v1551 = vand.u32 %v1346, 4294901760
    %1552 = vmatmul.mubr.f32.gmra.mxu0 %v1551
    %v1553 = vpop.f32.mrf.mxu0
    %v1554 = vadd.f32 %v1433, %v1553
    %v1555 = vpop.f32.mrf.mxu0
    %1556 = vmatprep.mubr.f32.mxu0 0.0
    %v1557 = vand.u32 %v1349, 4294901760
    %1558 = vmatmul.mubr.f32.gmra.mxu0 %v1557
    %v1559 = vpop.f32.mrf.mxu0
    %v1560 = vadd.f32 %v1443, %v1559
    %v1561 = vpop.f32.mrf.mxu0
    %1562 = vmatprep.mubr.f32.mxu0 0.0
    %v1563 = vand.u32 %v1352, 4294901760
    %1564 = vmatmul.mubr.f32.gmra.mxu0 %v1563
    %v1565 = vpop.f32.mrf.mxu0
    %v1566 = vadd.f32 %v1453, %v1565
    %v1567 = vpop.f32.mrf.mxu0
    %1568 = vmatprep.mubr.f32.mxu0 0.0
    %v1569 = vand.u32 %v1355, 4294901760
    %1570 = vmatmul.mubr.f32.gmra.mxu0 %v1569
    %v1571 = vpop.f32.mrf.mxu0
    %v1572 = vadd.f32 %v1463, %v1571
    %v1573 = vpop.f32.mrf.mxu0
    %1574 = vdwg.mxu0
    %1575 = vmatprep.subr.mxu0 0.0
    %1576 = vmatpush1.msra.mxu0 0.0
    %1577 = vmatprep.subr.mxu0 0.0
    %1578 = vmatpush1.msra.mxu0 0.0
    %1579 = vmatprep.subr.mxu0 0.0
    %1580 = vmatpush1.msra.mxu0 0.0
    %1581 = vmatprep.subr.mxu0 0.0
    %1582 = vmatpush1.msra.mxu0 0.0
    %1583 = vmatprep.subr.mxu0 0.0
    %1584 = vmatpush1.msra.mxu0 0.0
    %1585 = vmatprep.subr.mxu0 0.0
    %1586 = vmatpush1.msra.mxu0 0.0
    %1587 = vmatprep.subr.mxu0 0.0
    %1588 = vmatpush1.msra.mxu0 0.0
    %1589 = vmatprep.subr.mxu0 0.0
    %1590 = vmatpush1.msra.mxu0 0.0
    %1591 = vmatprep.subr.mxu0 0.0
    %1592 = vmatpush1.msra.mxu0 0.0
    %1593 = vmatprep.subr.mxu0 0.0
    %1594 = vmatpush1.msra.mxu0 0.0
    %1595 = vmatprep.subr.mxu0 0.0
    %1596 = vmatpush1.msra.mxu0 0.0
    %1597 = vmatprep.subr.mxu0 0.0
    %1598 = vmatpush1.msra.mxu0 0.0
    %1599 = vmatprep.subr.mxu0 0.0
    %v1600 = vand.u32 %v1316, 4294901760
    %v1601 = vsub.f32 %v1316, %v1600
    %1602 = vmatpush1.msra.mxu0 %v1601
    %1603 = vmatprep.subr.mxu0 0.0
    %v1604 = vand.u32 %v1315, 4294901760
    %v1605 = vsub.f32 %v1315, %v1604
    %1606 = vmatpush1.msra.mxu0 %v1605
    %1607 = vmatprep.subr.mxu0 0.0
    %v1608 = vand.u32 %v1314, 4294901760
    %v1609 = vsub.f32 %v1314, %v1608
    %1610 = vmatpush1.msra.mxu0 %v1609
    %1611 = vmatprep.subr.mxu0 0.0
    %v1612 = vand.u32 %v1313, 4294901760
    %v1613 = vsub.f32 %v1313, %v1612
    %1614 = vmatpush1.msra.mxu0 %v1613
    %1615 = vmatprep.subr.mxu0 0.0
    %1616 = vmatpush2.msra.mxu0 0.0
    %1617 = vmatprep.subr.mxu0 0.0
    %1618 = vmatpush2.msra.mxu0 0.0
    %1619 = vmatprep.subr.mxu0 0.0
    %1620 = vmatpush2.msra.mxu0 0.0
    %1621 = vmatprep.subr.mxu0 0.0
    %1622 = vmatpush2.msra.mxu0 0.0
    %1623 = vmatprep.subr.mxu0 0.0
    %1624 = vmatpush2.msra.mxu0 0.0
    %1625 = vmatprep.subr.mxu0 0.0
    %1626 = vmatpush2.msra.mxu0 0.0
    %1627 = vmatprep.subr.mxu0 0.0
    %1628 = vmatpush2.msra.mxu0 0.0
    %1629 = vmatprep.subr.mxu0 0.0
    %1630 = vmatpush2.msra.mxu0 0.0
    %1631 = vmatprep.subr.mxu0 0.0
    %1632 = vmatpush2.msra.mxu0 0.0
    %1633 = vmatprep.subr.mxu0 0.0
    %1634 = vmatpush2.msra.mxu0 0.0
    %1635 = vmatprep.subr.mxu0 0.0
    %1636 = vmatpush2.msra.mxu0 0.0
    %1637 = vmatprep.subr.mxu0 0.0
    %1638 = vmatpush2.msra.mxu0 0.0
    %1639 = vmatprep.subr.mxu0 0.0
    %1640 = vmatpush2.msra.mxu0 0.0
    %1641 = vmatprep.subr.mxu0 0.0
    %1642 = vmatpush2.msra.mxu0 0.0
    %1643 = vmatprep.subr.mxu0 0.0
    %1644 = vmatpush2.msra.mxu0 0.0
    %1645 = vmatprep.subr.mxu0 0.0
    %1646 = vmatpush2.msra.mxu0 0.0
    %1647 = vmatprep.mubr.f32.mxu0 0.0
    %v1648 = vand.u32 %v1346, 4294901760
    %v1649 = vsub.f32 %v1346, %v1648
    %1650 = vmatmul.mubr.f32.gmra.mxu0 %v1649
    %v1651 = vpop.f32.mrf.mxu0
    %v1652 = vadd.f32 %v1554, %v1651
    %v1653 = vpop.f32.mrf.mxu0
    %1654 = vmatprep.mubr.f32.mxu0 0.0
    %v1655 = vand.u32 %v1349, 4294901760
    %v1656 = vsub.f32 %v1349, %v1655
    %1657 = vmatmul.mubr.f32.gmra.mxu0 %v1656
    %v1658 = vpop.f32.mrf.mxu0
    %v1659 = vadd.f32 %v1560, %v1658
    %v1660 = vpop.f32.mrf.mxu0
    %1661 = vmatprep.mubr.f32.mxu0 0.0
    %v1662 = vand.u32 %v1352, 4294901760
    %v1663 = vsub.f32 %v1352, %v1662
    %1664 = vmatmul.mubr.f32.gmra.mxu0 %v1663
    %v1665 = vpop.f32.mrf.mxu0
    %v1666 = vadd.f32 %v1566, %v1665
    %v1667 = vpop.f32.mrf.mxu0
    %1668 = vmatprep.mubr.f32.mxu0 0.0
    %v1669 = vand.u32 %v1355, 4294901760
    %v1670 = vsub.f32 %v1355, %v1669
    %1671 = vmatmul.mubr.f32.gmra.mxu0 %v1670
    %v1672 = vpop.f32.mrf.mxu0
    %v1673 = vadd.f32 %v1572, %v1672
    %v1674 = vpop.f32.mrf.mxu0
    %1675 = vdwg.mxu0
    %1676 = vmatprep.subr.mxu0 0.0
    %1677 = vmatpush1.msra.mxu0 0.0
    %1678 = vmatprep.subr.mxu0 0.0
    %1679 = vmatpush1.msra.mxu0 0.0
    %1680 = vmatprep.subr.mxu0 0.0
    %1681 = vmatpush1.msra.mxu0 0.0
    %1682 = vmatprep.subr.mxu0 0.0
    %1683 = vmatpush1.msra.mxu0 0.0
    %1684 = vmatprep.subr.mxu0 0.0
    %1685 = vmatpush1.msra.mxu0 0.0
    %1686 = vmatprep.subr.mxu0 0.0
    %1687 = vmatpush1.msra.mxu0 0.0
    %1688 = vmatprep.subr.mxu0 0.0
    %1689 = vmatpush1.msra.mxu0 0.0
    %1690 = vmatprep.subr.mxu0 0.0
    %1691 = vmatpush1.msra.mxu0 0.0
    %1692 = vmatprep.subr.mxu0 0.0
    %1693 = vmatpush1.msra.mxu0 0.0
    %1694 = vmatprep.subr.mxu0 0.0
    %1695 = vmatpush1.msra.mxu0 0.0
    %1696 = vmatprep.subr.mxu0 0.0
    %1697 = vmatpush1.msra.mxu0 0.0
    %1698 = vmatprep.subr.mxu0 0.0
    %1699 = vmatpush1.msra.mxu0 0.0
    %1700 = vmatprep.subr.mxu0 0.0
    %v1701 = vand.u32 %v1316, 4294901760
    %1702 = vmatpush1.msra.mxu0 %v1701
    %1703 = vmatprep.subr.mxu0 0.0
    %v1704 = vand.u32 %v1315, 4294901760
    %1705 = vmatpush1.msra.mxu0 %v1704
    %1706 = vmatprep.subr.mxu0 0.0
    %v1707 = vand.u32 %v1314, 4294901760
    %1708 = vmatpush1.msra.mxu0 %v1707
    %1709 = vmatprep.subr.mxu0 0.0
    %v1710 = vand.u32 %v1313, 4294901760
    %1711 = vmatpush1.msra.mxu0 %v1710
    %1712 = vmatprep.subr.mxu0 0.0
    %1713 = vmatpush2.msra.mxu0 0.0
    %1714 = vmatprep.subr.mxu0 0.0
    %1715 = vmatpush2.msra.mxu0 0.0
    %1716 = vmatprep.subr.mxu0 0.0
    %1717 = vmatpush2.msra.mxu0 0.0
    %1718 = vmatprep.subr.mxu0 0.0
    %1719 = vmatpush2.msra.mxu0 0.0
    %1720 = vmatprep.subr.mxu0 0.0
    %1721 = vmatpush2.msra.mxu0 0.0
    %1722 = vmatprep.subr.mxu0 0.0
    %1723 = vmatpush2.msra.mxu0 0.0
    %1724 = vmatprep.subr.mxu0 0.0
    %1725 = vmatpush2.msra.mxu0 0.0
    %1726 = vmatprep.subr.mxu0 0.0
    %1727 = vmatpush2.msra.mxu0 0.0
    %1728 = vmatprep.subr.mxu0 0.0
    %1729 = vmatpush2.msra.mxu0 0.0
    %1730 = vmatprep.subr.mxu0 0.0
    %1731 = vmatpush2.msra.mxu0 0.0
    %1732 = vmatprep.subr.mxu0 0.0
    %1733 = vmatpush2.msra.mxu0 0.0
    %1734 = vmatprep.subr.mxu0 0.0
    %1735 = vmatpush2.msra.mxu0 0.0
    %1736 = vmatprep.subr.mxu0 0.0
    %1737 = vmatpush2.msra.mxu0 0.0
    %1738 = vmatprep.subr.mxu0 0.0
    %1739 = vmatpush2.msra.mxu0 0.0
    %1740 = vmatprep.subr.mxu0 0.0
    %1741 = vmatpush2.msra.mxu0 0.0
    %1742 = vmatprep.subr.mxu0 0.0
    %1743 = vmatpush2.msra.mxu0 0.0
    %1744 = vmatprep.mubr.f32.mxu0 0.0
    %v1745 = vand.u32 %v1346, 4294901760
    %v1746 = vsub.f32 %v1346, %v1745
    %v1747 = vand.u32 %v1746, 4294901760
    %1748 = vmatmul.mubr.f32.gmra.mxu0 %v1747
    %v1749 = vpop.f32.mrf.mxu0
    %v1750 = vadd.f32 %v1652, %v1749
    %v1751 = vpop.f32.mrf.mxu0
    %1752 = vmatprep.mubr.f32.mxu0 0.0
    %v1753 = vand.u32 %v1349, 4294901760
    %v1754 = vsub.f32 %v1349, %v1753
    %v1755 = vand.u32 %v1754, 4294901760
    %1756 = vmatmul.mubr.f32.gmra.mxu0 %v1755
    %v1757 = vpop.f32.mrf.mxu0
    %v1758 = vadd.f32 %v1659, %v1757
    %v1759 = vpop.f32.mrf.mxu0
    %1760 = vmatprep.mubr.f32.mxu0 0.0
    %v1761 = vand.u32 %v1352, 4294901760
    %v1762 = vsub.f32 %v1352, %v1761
    %v1763 = vand.u32 %v1762, 4294901760
    %1764 = vmatmul.mubr.f32.gmra.mxu0 %v1763
    %v1765 = vpop.f32.mrf.mxu0
    %v1766 = vadd.f32 %v1666, %v1765
    %v1767 = vpop.f32.mrf.mxu0
    %1768 = vmatprep.mubr.f32.mxu0 0.0
    %v1769 = vand.u32 %v1355, 4294901760
    %v1770 = vsub.f32 %v1355, %v1769
    %v1771 = vand.u32 %v1770, 4294901760
    %1772 = vmatmul.mubr.f32.gmra.mxu0 %v1771
    %v1773 = vpop.f32.mrf.mxu0
    %v1774 = vadd.f32 %v1673, %v1773
    %v1775 = vpop.f32.mrf.mxu0
    %1776 = vdwg.mxu0
    %1777 = vmatprep.subr.mxu0 0.0
    %1778 = vmatpush1.msra.mxu0 0.0
    %1779 = vmatprep.subr.mxu0 0.0
    %1780 = vmatpush1.msra.mxu0 0.0
    %1781 = vmatprep.subr.mxu0 0.0
    %1782 = vmatpush1.msra.mxu0 0.0
    %1783 = vmatprep.subr.mxu0 0.0
    %1784 = vmatpush1.msra.mxu0 0.0
    %1785 = vmatprep.subr.mxu0 0.0
    %1786 = vmatpush1.msra.mxu0 0.0
    %1787 = vmatprep.subr.mxu0 0.0
    %1788 = vmatpush1.msra.mxu0 0.0
    %1789 = vmatprep.subr.mxu0 0.0
    %1790 = vmatpush1.msra.mxu0 0.0
    %1791 = vmatprep.subr.mxu0 0.0
    %1792 = vmatpush1.msra.mxu0 0.0
    %1793 = vmatprep.subr.mxu0 0.0
    %1794 = vmatpush1.msra.mxu0 0.0
    %1795 = vmatprep.subr.mxu0 0.0
    %1796 = vmatpush1.msra.mxu0 0.0
    %1797 = vmatprep.subr.mxu0 0.0
    %1798 = vmatpush1.msra.mxu0 0.0
    %1799 = vmatprep.subr.mxu0 0.0
    %1800 = vmatpush1.msra.mxu0 0.0
    %1801 = vmatprep.subr.mxu0 0.0
    %v1802 = vand.u32 %v1316, 4294901760
    %v1803 = vsub.f32 %v1316, %v1802
    %v1804 = vand.u32 %v1803, 4294901760
    %1805 = vmatpush1.msra.mxu0 %v1804
    %1806 = vmatprep.subr.mxu0 0.0
    %v1807 = vand.u32 %v1315, 4294901760
    %v1808 = vsub.f32 %v1315, %v1807
    %v1809 = vand.u32 %v1808, 4294901760
    %1810 = vmatpush1.msra.mxu0 %v1809
    %1811 = vmatprep.subr.mxu0 0.0
    %v1812 = vand.u32 %v1314, 4294901760
    %v1813 = vsub.f32 %v1314, %v1812
    %v1814 = vand.u32 %v1813, 4294901760
    %1815 = vmatpush1.msra.mxu0 %v1814
    %1816 = vmatprep.subr.mxu0 0.0
    %v1817 = vand.u32 %v1313, 4294901760
    %v1818 = vsub.f32 %v1313, %v1817
    %v1819 = vand.u32 %v1818, 4294901760
    %1820 = vmatpush1.msra.mxu0 %v1819
    %1821 = vmatprep.subr.mxu0 0.0
    %1822 = vmatpush2.msra.mxu0 0.0
    %1823 = vmatprep.subr.mxu0 0.0
    %1824 = vmatpush2.msra.mxu0 0.0
    %1825 = vmatprep.subr.mxu0 0.0
    %1826 = vmatpush2.msra.mxu0 0.0
    %1827 = vmatprep.subr.mxu0 0.0
    %1828 = vmatpush2.msra.mxu0 0.0
    %1829 = vmatprep.subr.mxu0 0.0
    %1830 = vmatpush2.msra.mxu0 0.0
    %1831 = vmatprep.subr.mxu0 0.0
    %1832 = vmatpush2.msra.mxu0 0.0
    %1833 = vmatprep.subr.mxu0 0.0
    %1834 = vmatpush2.msra.mxu0 0.0
    %1835 = vmatprep.subr.mxu0 0.0
    %1836 = vmatpush2.msra.mxu0 0.0
    %1837 = vmatprep.subr.mxu0 0.0
    %1838 = vmatpush2.msra.mxu0 0.0
    %1839 = vmatprep.subr.mxu0 0.0
    %1840 = vmatpush2.msra.mxu0 0.0
    %1841 = vmatprep.subr.mxu0 0.0
    %1842 = vmatpush2.msra.mxu0 0.0
    %1843 = vmatprep.subr.mxu0 0.0
    %1844 = vmatpush2.msra.mxu0 0.0
    %1845 = vmatprep.subr.mxu0 0.0
    %1846 = vmatpush2.msra.mxu0 0.0
    %1847 = vmatprep.subr.mxu0 0.0
    %1848 = vmatpush2.msra.mxu0 0.0
    %1849 = vmatprep.subr.mxu0 0.0
    %1850 = vmatpush2.msra.mxu0 0.0
    %1851 = vmatprep.subr.mxu0 0.0
    %1852 = vmatpush2.msra.mxu0 0.0
    %1853 = vmatprep.mubr.f32.mxu0 0.0
    %v1854 = vand.u32 %v1346, 4294901760
    %1855 = vmatmul.mubr.f32.gmra.mxu0 %v1854
    %v1856 = vpop.f32.mrf.mxu0
    %v1857 = vadd.f32 %v1750, %v1856
    %v1858 = vpop.f32.mrf.mxu0
    %1859 = vmatprep.mubr.f32.mxu0 0.0
    %v1860 = vand.u32 %v1349, 4294901760
    %1861 = vmatmul.mubr.f32.gmra.mxu0 %v1860
    %v1862 = vpop.f32.mrf.mxu0
    %v1863 = vadd.f32 %v1758, %v1862
    %v1864 = vpop.f32.mrf.mxu0
    %1865 = vmatprep.mubr.f32.mxu0 0.0
    %v1866 = vand.u32 %v1352, 4294901760
    %1867 = vmatmul.mubr.f32.gmra.mxu0 %v1866
    %v1868 = vpop.f32.mrf.mxu0
    %v1869 = vadd.f32 %v1766, %v1868
    %v1870 = vpop.f32.mrf.mxu0
    %1871 = vmatprep.mubr.f32.mxu0 0.0
    %v1872 = vand.u32 %v1355, 4294901760
    %1873 = vmatmul.mubr.f32.gmra.mxu0 %v1872
    %v1874 = vpop.f32.mrf.mxu0
    %v1875 = vadd.f32 %v1774, %v1874
    %v1876 = vpop.f32.mrf.mxu0
    %1877 = vdwg.mxu0
    %1878 = vmatprep.subr.mxu0 0.0
    %1879 = vmatpush1.msra.mxu0 0.0
    %1880 = vmatprep.subr.mxu0 0.0
    %1881 = vmatpush1.msra.mxu0 0.0
    %1882 = vmatprep.subr.mxu0 0.0
    %1883 = vmatpush1.msra.mxu0 0.0
    %1884 = vmatprep.subr.mxu0 0.0
    %1885 = vmatpush1.msra.mxu0 0.0
    %1886 = vmatprep.subr.mxu0 0.0
    %1887 = vmatpush1.msra.mxu0 0.0
    %1888 = vmatprep.subr.mxu0 0.0
    %1889 = vmatpush1.msra.mxu0 0.0
    %1890 = vmatprep.subr.mxu0 0.0
    %1891 = vmatpush1.msra.mxu0 0.0
    %1892 = vmatprep.subr.mxu0 0.0
    %1893 = vmatpush1.msra.mxu0 0.0
    %1894 = vmatprep.subr.mxu0 0.0
    %1895 = vmatpush1.msra.mxu0 0.0
    %1896 = vmatprep.subr.mxu0 0.0
    %1897 = vmatpush1.msra.mxu0 0.0
    %1898 = vmatprep.subr.mxu0 0.0
    %1899 = vmatpush1.msra.mxu0 0.0
    %1900 = vmatprep.subr.mxu0 0.0
    %1901 = vmatpush1.msra.mxu0 0.0
    %1902 = vmatprep.subr.mxu0 0.0
    %v1903 = vand.u32 %v1316, 4294901760
    %1904 = vmatpush1.msra.mxu0 %v1903
    %1905 = vmatprep.subr.mxu0 0.0
    %v1906 = vand.u32 %v1315, 4294901760
    %1907 = vmatpush1.msra.mxu0 %v1906
    %1908 = vmatprep.subr.mxu0 0.0
    %v1909 = vand.u32 %v1314, 4294901760
    %1910 = vmatpush1.msra.mxu0 %v1909
    %1911 = vmatprep.subr.mxu0 0.0
    %v1912 = vand.u32 %v1313, 4294901760
    %1913 = vmatpush1.msra.mxu0 %v1912
    %1914 = vmatprep.subr.mxu0 0.0
    %1915 = vmatpush2.msra.mxu0 0.0
    %1916 = vmatprep.subr.mxu0 0.0
    %1917 = vmatpush2.msra.mxu0 0.0
    %1918 = vmatprep.subr.mxu0 0.0
    %1919 = vmatpush2.msra.mxu0 0.0
    %1920 = vmatprep.subr.mxu0 0.0
    %1921 = vmatpush2.msra.mxu0 0.0
    %1922 = vmatprep.subr.mxu0 0.0
    %1923 = vmatpush2.msra.mxu0 0.0
    %1924 = vmatprep.subr.mxu0 0.0
    %1925 = vmatpush2.msra.mxu0 0.0
    %1926 = vmatprep.subr.mxu0 0.0
    %1927 = vmatpush2.msra.mxu0 0.0
    %1928 = vmatprep.subr.mxu0 0.0
    %1929 = vmatpush2.msra.mxu0 0.0
    %1930 = vmatprep.subr.mxu0 0.0
    %1931 = vmatpush2.msra.mxu0 0.0
    %1932 = vmatprep.subr.mxu0 0.0
    %1933 = vmatpush2.msra.mxu0 0.0
    %1934 = vmatprep.subr.mxu0 0.0
    %1935 = vmatpush2.msra.mxu0 0.0
    %1936 = vmatprep.subr.mxu0 0.0
    %1937 = vmatpush2.msra.mxu0 0.0
    %1938 = vmatprep.subr.mxu0 0.0
    %1939 = vmatpush2.msra.mxu0 0.0
    %1940 = vmatprep.subr.mxu0 0.0
    %1941 = vmatpush2.msra.mxu0 0.0
    %1942 = vmatprep.subr.mxu0 0.0
    %1943 = vmatpush2.msra.mxu0 0.0
    %1944 = vmatprep.subr.mxu0 0.0
    %1945 = vmatpush2.msra.mxu0 0.0
    %1946 = vmatprep.mubr.f32.mxu0 0.0
    %v1947 = vand.u32 %v1346, 4294901760
    %1948 = vmatmul.mubr.f32.gmra.mxu0 %v1947
    %v1949 = vpop.f32.mrf.mxu0
    %v1950 = vadd.f32 %v1857, %v1949
    %v1951 = vpop.f32.mrf.mxu0
    %1952 = vmatprep.mubr.f32.mxu0 0.0
    %v1953 = vand.u32 %v1349, 4294901760
    %1954 = vmatmul.mubr.f32.gmra.mxu0 %v1953
    %v1955 = vpop.f32.mrf.mxu0
    %v1956 = vadd.f32 %v1863, %v1955
    %v1957 = vpop.f32.mrf.mxu0
    %1958 = vmatprep.mubr.f32.mxu0 0.0
    %v1959 = vand.u32 %v1352, 4294901760
    %1960 = vmatmul.mubr.f32.gmra.mxu0 %v1959
    %v1961 = vpop.f32.mrf.mxu0
    %v1962 = vadd.f32 %v1869, %v1961
    %v1963 = vpop.f32.mrf.mxu0
    %1964 = vmatprep.mubr.f32.mxu0 0.0
    %v1965 = vand.u32 %v1355, 4294901760
    %1966 = vmatmul.mubr.f32.gmra.mxu0 %v1965
    %v1967 = vpop.f32.mrf.mxu0
    %v1968 = vadd.f32 %v1875, %v1967
    %v1969 = vpop.f32.mrf.mxu0
    %1970 = vdwg.mxu0
    %v1971 = vtanh.pop %v1950
    %v1972 = vtanh.pop %v1956
    %v1973 = vtanh.pop %v1962
    %v1974 = vtanh.pop %v1968
    %v1975 = vld [vmem:[%s7] sm:$0xff]
    %v1976 = vld [vmem:[%s7 + $0x8] sm:$0xff]
    %v1977 = vld [vmem:[%s7 + $0x10] sm:$0xff]
    %v1978 = vld [vmem:[%s7 + $0x18] sm:$0xff]
    %v1979 = vld [vmem:[#allocation2] sm:$0x1]
    %1981 = vset.pattern.permute.xlu0 0
    %1982 = vperm.xlu0 %1981, %v1975
    %v1983 = vpop.permute.xlu0 %1982
    %1986 = vset.pattern.permute.xlu0 0
    %1987 = vperm.xlu0 %1986, %v1976
    %v1988 = vpop.permute.xlu0 %1987
    %1991 = vset.pattern.permute.xlu0 0
    %1992 = vperm.xlu0 %1991, %v1977
    %v1993 = vpop.permute.xlu0 %1992
    %1996 = vset.pattern.permute.xlu0 0
    %1997 = vperm.xlu0 %1996, %v1978
    %v1998 = vpop.permute.xlu0 %1997
    %v2000 = vmul.f32 %v1983, %v1971
    %v2001 = vmul.f32 %v1988, %v1972
    %v2002 = vmul.f32 %v1993, %v1973
    %v2003 = vmul.f32 %v1998, %v1974
    %vm2004 = vcmask 64512
    %v2005 = vsel %vm2004, %v2000, 0.0
    %v2006 = vsel %vm2004, %v2001, 0.0
    %v2007 = vadd.f32 %v2005, %v2006
    %v2008 = vsel %vm2004, %v2002, 0.0
    %v2009 = vadd.f32 %v2007, %v2008
    %v2010 = vsel %vm2004, %v2003, 0.0
    %v2011 = vadd.f32 %v2009, %v2010
    %v2012 = vrot.slane %v2011, 4
    %v2013 = vadd.f32 %v2011, %v2012
    %v2014 = vrot.slane %v2013, 2
    %v2015 = vadd.f32 %v2013, %v2014
    %v2016 = vrot.slane %v2015, 1
    %v2017 = vadd.f32 %v2015, %v2016
    %2019 = vset.pattern.permute.xlu0 0
    %2020 = vperm.xlu0 %2019, %v1979
    %v2021 = vpop.permute.xlu0 %2020
    %v2023 = vlaneseq
    %v2024 = vshrl.u32 %v2023, 7
    %v2025 = vsub.s32 0, %v2024
    %v2026 = vrot.slane %v2021, %v2025
    %v2027 = vadd.f32 %v2017, %v2026
    %vm2028 = vcmask 57344
    %2029 = vst.msk [vmem:[#allocation3] sm:$0x1] %vm2028, %v2027
    // Predicated region
    $region38: #{tpu_custom_call.1} parent=1 // pred_check
      _
    $region39: #{tpu_custom_call.1} parent=1 // pred_check_branch
      %2031 = sbr.rel (0) target = $region41
    $region40: #{tpu_custom_call.1} parent=1 // pred_region
      %s2033 = ssub.s32 16, 16
      %2034 = vsyncadd [#allocation4], %s2033
      %s2036 = sshll.u32 [#allocation3], 4
      %s2037 = int_to_ptr.vmem [resolvable:$true] %s2036
      %2039 = dma.vmem_to_hbm [thread:$0]  %s2037, 16, %s9, [#allocation4]
    $region41: #{tpu_custom_call.1} parent=1 // pred_fallthru
      _
    // Predicated region
    $region42: #{tpu_custom_call.1} parent=1 // pred_check
      _
    $region43: #{tpu_custom_call.1} parent=1 // pred_check_branch
      %2041 = sbr.rel (0) target = $region45
    $region44: #{tpu_custom_call.1} parent=1 // pred_region
      %2042 = dma.done [#allocation4], 16
    $region45: #{tpu_custom_call.1} parent=1 // pred_fallthru
      _
    %2043 = vsyncpa [#allocation4], 1

</llo_original>
